<compile_context>
chip_gen: v7x
topology: tpu7x:2x2x1
jax: 0.10.0
libtpu: 0.0.40
codegen_flags: <defaults>
</compile_context>

<pallas_src>
import functools

import jax
import jax.numpy as jnp
import numpy as np
from jax import lax
from jax.experimental import pallas as pl
from jax.experimental.pallas import tpu as pltpu

# --- norse LIFParameters defaults + module constants ---
DT = 0.001
TAU_SYN_INV = 200.0          # 1 / 5e-3
TAU_MEM_INV = 100.0          # 1 / 1e-2
V_LEAK = 0.0
V_TH = 1.0
V_RESET = 0.0
DEFAULT_TAU_FILTER_INV = 223.1435511314


def _round_up(n, m):
    return ((n + m - 1) // m) * m


# ---------------------------------------------------------------------------
# Kernel 1: sequential LIF recurrence (the only serial part on the critical
# path: z @ W_rec^T + elementwise LIF update).
# ---------------------------------------------------------------------------
def _lif_recurrent_kernel(xp_ref, w_rec_ref,
                          z_seq_ref, z_fin_ref, v_fin_ref, i_fin_ref,
                          z_s, v_s, i_s, *, t_chunk, seq_len):
    c = pl.program_id(0)

    # norse initial_state at the very first timestep
    @pl.when(c == 0)
    def _init():
        z_s[...] = jnp.zeros_like(z_s)
        v_s[...] = jnp.full_like(v_s, V_LEAK)
        i_s[...] = jnp.zeros_like(i_s)

    w_rec = w_rec_ref[...]        # resident (H_pad, H_pad) recurrent weight

    def step(k, carry):
        z, v, i = carry
        # LIF step (norse lif_step semantics; SuperSpike forward = heaviside)
        v_decayed = v + DT * TAU_MEM_INV * ((V_LEAK - v) + i)
        i_decayed = i - DT * TAU_SYN_INV * i
        z_new = (v_decayed - V_TH > 0.0).astype(jnp.float32)
        v_new = (1.0 - z_new) * v_decayed + z_new * V_RESET
        i_new = (i_decayed
                 + xp_ref[k]      # hoisted x @ W_in^T (precomputed, per step)
                 + jnp.dot(z, w_rec, preferred_element_type=jnp.float32))

        # record the spike train for this step
        z_seq_ref[k] = z_new

        # Mask the carry on zero-padded tail timesteps so the returned final
        # state is exactly the state after step seq_len - 1.
        m = ((c * t_chunk + k) < seq_len).astype(jnp.float32)
        z = m * z_new + (1.0 - m) * z
        v = m * v_new + (1.0 - m) * v
        i = m * i_new + (1.0 - m) * i
        return z, v, i

    z, v, i = lax.fori_loop(0, t_chunk, step,
                            (z_s[...], v_s[...], i_s[...]), unroll=True)
    z_s[...] = z
    v_s[...] = v
    i_s[...] = i

    # Final LIF state: store only once, on the last grid step.
    @pl.when(c == pl.num_programs(0) - 1)
    def _final():
        z_fin_ref[...] = z_s[...]
        v_fin_ref[...] = v_s[...]
        i_fin_ref[...] = i_s[...]


# ---------------------------------------------------------------------------
# Kernel 2: exponential filter along time (readout GEMM is done outside).
# ---------------------------------------------------------------------------
def _exp_filter_kernel(lin_ref, out_ref, f_s, *, t_chunk, tau_filter_inv):
    c = pl.program_id(0)
    a = DT * tau_filter_inv

    @pl.when(c == 0)
    def _init():
        f_s[...] = jnp.zeros_like(f_s)

    def step(k, f):
        l = lin_ref[k]
        first = ((c * t_chunk + k) == 0).astype(jnp.float32)
        f_new = first * l + (1.0 - first) * (f + a * (l - f))
        out_ref[k] = f_new
        return f_new

    f_s[...] = lax.fori_loop(0, t_chunk, step, f_s[...], unroll=True)


# ---------------------------------------------------------------------------
# Wrapper
# ---------------------------------------------------------------------------
@functools.partial(jax.jit, static_argnames=("tau_filter_inv", "t_chunk"))
def snn_lif_forward(x, w_in, w_rec, w_out, b_out,
                    tau_filter_inv=DEFAULT_TAU_FILTER_INV, t_chunk=8):
    """x: (T, B, F) time-major. Weights are torch-style (out_features, in_features)."""
    x = jnp.asarray(x, jnp.float32)
    T, B, F = x.shape
    H = w_in.shape[0]
    O = w_out.shape[0]

    # lane/sublane-dense padded sizes (zero padding is exactly neutral for LIF)
    B_pad = _round_up(max(B, 8), 8)
    H_pad = _round_up(max(H, 128), 128)
    O_pad = _round_up(max(O, 128), 128)
    t_chunk = min(int(t_chunk), T)
    T_pad = _round_up(T, t_chunk)
    n_chunks = T_pad // t_chunk

    # --- 1) hoisted input projection: one big MXU GEMM over all timesteps ---
    w_in_t = jnp.asarray(w_in, jnp.float32).T                      # (F, H)
    x_proj = jnp.einsum("tbf,fh->tbh", x, w_in_t)                  # (T, B, H)
    x_proj_pad = jnp.zeros((T_pad, B_pad, H_pad), jnp.float32)
    x_proj_pad = x_proj_pad.at[:T, :B, :H].set(x_proj)

    w_rec_t = jnp.asarray(w_rec, jnp.float32).T                    # (H, H)
    w_rec_pad = jnp.zeros((H_pad, H_pad), jnp.float32).at[:H, :H].set(w_rec_t)

    # --- 2) sequential LIF recurrence kernel (chunked time axis) ---
    lif_kernel = functools.partial(_lif_recurrent_kernel,
                                   t_chunk=t_chunk, seq_len=T)
    out_shapes = (
        jax.ShapeDtypeStruct((T_pad, B_pad, H_pad), jnp.float32),  # spikes
        jax.ShapeDtypeStruct((B_pad, H_pad), jnp.float32),         # final z
        jax.ShapeDtypeStruct((B_pad, H_pad), jnp.float32),         # final v
        jax.ShapeDtypeStruct((B_pad, H_pad), jnp.float32),         # final i
    )
    grid_spec = pltpu.PrefetchScalarGridSpec(
        num_scalar_prefetch=0,
        grid=(n_chunks,),
        in_specs=[
            pl.BlockSpec((t_chunk, B_pad, H_pad), lambda c: (c, 0, 0)),  # x_proj
            pl.BlockSpec((H_pad, H_pad), lambda c: (0, 0)),              # W_rec^T
        ],
        out_specs=[
            pl.BlockSpec((t_chunk, B_pad, H_pad), lambda c: (c, 0, 0)),
            pl.BlockSpec((B_pad, H_pad), lambda c: (0, 0)),
            pl.BlockSpec((B_pad, H_pad), lambda c: (0, 0)),
            pl.BlockSpec((B_pad, H_pad), lambda c: (0, 0)),
        ],
        scratch_shapes=[
            pltpu.VMEM((B_pad, H_pad), jnp.float32),   # z carry
            pltpu.VMEM((B_pad, H_pad), jnp.float32),   # v carry
            pltpu.VMEM((B_pad, H_pad), jnp.float32),   # i carry
        ],
    )
    spikes_pad, z_f, v_f, i_f = pl.pallas_call(
        lif_kernel,
        out_shape=out_shapes,
        grid_spec=grid_spec,
        compiler_params=pltpu.CompilerParams(
            dimension_semantics=("arbitrary",)),       # time is a serial carry
    )(x_proj_pad, w_rec_pad)

    # --- 3) deferred readout: one big lane-dense GEMM over all timesteps ---
    w_out_t = jnp.asarray(w_out, jnp.float32).T                    # (H, O)
    w_out_pad = jnp.zeros((H_pad, O_pad), jnp.float32).at[:H, :O].set(w_out_t)
    b_pad = jnp.zeros((O_pad,), jnp.float32)
    b_pad = b_pad.at[:O].set(jnp.asarray(b_out, jnp.float32))
    lin_pad = jnp.einsum("tbh,ho->tbo", spikes_pad, w_out_pad) + b_pad

    # --- 4) exponential filter pass (sequential but trivially cheap) ---
    filt_kernel = functools.partial(_exp_filter_kernel, t_chunk=t_chunk,
                                    tau_filter_inv=float(tau_filter_inv))
    out_pad = pl.pallas_call(
        filt_kernel,
        out_shape=jax.ShapeDtypeStruct((T_pad, B_pad, O_pad), jnp.float32),
        grid_spec=pltpu.PrefetchScalarGridSpec(
            num_scalar_prefetch=0,
            grid=(n_chunks,),
            in_specs=[pl.BlockSpec((t_chunk, B_pad, O_pad), lambda c: (c, 0, 0))],
            out_specs=pl.BlockSpec((t_chunk, B_pad, O_pad), lambda c: (c, 0, 0)),
            scratch_shapes=[pltpu.VMEM((B_pad, O_pad), jnp.float32)],
        ),
        compiler_params=pltpu.CompilerParams(
            dimension_semantics=("arbitrary",)),
    )(lin_pad)

    outputs = out_pad[:T, :B, :O]
    return outputs, (z_f[:B, :H], v_f[:B, :H], i_f[:B, :H])


def snn_lif_reference(x, w_in, w_rec, w_out, b_out,
                      tau_filter_inv=DEFAULT_TAU_FILTER_INV):
    """Pure-JAX reference (same semantics as norse LIFRecurrent + ExpFilter)."""
    T, B, F = x.shape
    H = w_in.shape[0]

    def lif_step(carry, x_t):
        z, v, i = carry
        v_decayed = v + DT * TAU_MEM_INV * ((V_LEAK - v) + i)
        i_decayed = i - DT * TAU_SYN_INV * i
        z_new = (v_decayed - V_TH > 0.0).astype(jnp.float32)
        v_new = (1.0 - z_new) * v_decayed + z_new * V_RESET
        i_new = i_decayed + x_t @ w_in.T + z @ w_rec.T
        return (z_new, v_new, i_new), z_new

    init = (jnp.zeros((B, H)), jnp.full((B, H), V_LEAK), jnp.zeros((B, H)))
    final_state, spikes = jax.lax.scan(lif_step, init, x)

    lin = spikes @ w_out.T + b_out  # (T, B, O)

    def filt_step(f, l):
        f_new = f + DT * tau_filter_inv * (l - f)
        return f_new, f_new

    f0 = lin[0]
    _, rest = jax.lax.scan(filt_step, f0, lin[1:])
    outputs = jnp.concatenate([f0[None], rest], axis=0)
    return outputs, final_state


# TODO(synk): SuperSpike surrogate gradient (backward pass) is not implemented;
# only the forward heaviside semantics are reproduced, matching module.forward.

if __name__ == "__main__":
    key = jax.random.PRNGKey(0)
    T, B, F, H, O = 8, 2, 16, 32, 4   # seq, batch, feature, hidden, output

    kx, k1, k2, k3, k4 = jax.random.split(key, 5)
    # inputs scaled up so the LIF layer actually emits spikes
    x = 3.0 * jax.random.normal(kx, (T, B, F), jnp.float32)
    # norse-style recurrent cell init: randn * sqrt(2 / hidden)
    w_in = jax.random.normal(k1, (H, F), jnp.float32) * jnp.sqrt(2.0 / H)
    w_rec = jax.random.normal(k2, (H, H), jnp.float32) * jnp.sqrt(2.0 / H)
    # torch.nn.Linear-style uniform init for the readout
    lim = 1.0 / jnp.sqrt(jnp.float32(H))
    w_out = jax.random.uniform(k3, (O, H), jnp.float32, -lim, lim)
    b_out = jax.random.uniform(k4, (O,), jnp.float32, -lim, lim)

    outputs, (z_f, v_f, i_f) = snn_lif_forward(x, w_in, w_rec, w_out, b_out)
    jax.block_until_ready(outputs)

    ref_out, (rz, rv, ri) = snn_lif_reference(x, w_in, w_rec, w_out, b_out)
    assert outputs.shape == (T, B, O)
    np.testing.assert_allclose(np.asarray(outputs), np.asarray(ref_out),
                               rtol=1e-4, atol=1e-4)
    np.testing.assert_allclose(np.asarray(z_f), np.asarray(rz), rtol=1e-4, atol=1e-4)
    np.testing.assert_allclose(np.asarray(v_f), np.asarray(rv), rtol=1e-4, atol=1e-4)
    np.testing.assert_allclose(np.asarray(i_f), np.asarray(ri), rtol=1e-4, atol=1e-4)

    print("KERNEL_OK")
</pallas_src>

<mosaic_0001>
module attributes {stable_mosaic.version = 11 : i64} {
  func.func @_exp_filter_kernel(%arg0: i32, %arg1: memref<8x8x128xf32, #tpu.memory_space<vmem>>, %arg2: memref<8x8x128xf32, #tpu.memory_space<vmem>>, %arg3: memref<8x128xf32, #tpu.memory_space<vmem>>) attributes {dimension_semantics = [#tpu.dimension_semantics<arbitrary>], iteration_bounds = array<i64: 1>, scalar_prefetch = 0 : i64, scratch_operands = 1 : i64, tpu.core_type = #tpu.core_type<tc>, window_params = [{transform_indices = @transform_0, window_bounds = array<i64: 8, 8, 128>}, {transform_indices = @transform_1, window_bounds = array<i64: 8, 8, 128>}]} {
    %c0_i32 = arith.constant 0 : i32
    %0 = arith.cmpi eq, %arg0, %c0_i32 : i32
    %1 = arith.extui %0 : i1 to i32
    %c0_i32_0 = arith.constant 0 : i32
    %2 = arith.cmpi ne, %1, %c0_i32_0 : i32
    scf.if %2 {
      %cst_68 = arith.constant 0.000000e+00 : f32
      %181 = vector.broadcast %cst_68 : f32 to vector<8x128xf32>
      %c0_69 = arith.constant 0 : index
      %c0_70 = arith.constant 0 : index
      %182 = vector.load %arg3[%c0_69, %c0_70] : memref<8x128xf32, #tpu.memory_space<vmem>>, vector<8x128xf32>
      tpu.vector_store %arg3[%c0_69, %c0_70], %181 {strides = array<i32>} : memref<8x128xf32, #tpu.memory_space<vmem>>, vector<8x128xf32>,
    } else {
    }
    %c0 = arith.constant 0 : index
    %c0_1 = arith.constant 0 : index
    %3 = vector.load %arg3[%c0, %c0_1] : memref<8x128xf32, #tpu.memory_space<vmem>>, vector<8x128xf32>
    %c0_i32_2 = arith.constant 0 : i32
    %4 = arith.index_cast %c0_i32_2 : i32 to index
    %c0_3 = arith.constant 0 : index
    %c0_4 = arith.constant 0 : index
    %5 = vector.load %arg1[%4, %c0_3, %c0_4] : memref<8x8x128xf32, #tpu.memory_space<vmem>>, vector<1x8x128xf32>
    %6 = vector.shape_cast %5 : vector<1x8x128xf32> to vector<8x128xf32>
    %c8_i32 = arith.constant 8 : i32
    %7 = arith.muli %arg0, %c8_i32 : i32
    %8 = arith.addi %7, %c0_i32_2 : i32
    %c0_i32_5 = arith.constant 0 : i32
    %9 = arith.cmpi eq, %8, %c0_i32_5 : i32
    %10 = arith.extui %9 : i1 to i32
    %11 = arith.sitofp %10 : i32 to f32
    %12 = vector.broadcast %11 : f32 to vector<8x128xf32>
    %13 = arith.mulf %12, %6 : vector<8x128xf32>
    %cst = arith.constant 1.000000e+00 : f32
    %14 = arith.subf %cst, %11 : f32
    %15 = arith.subf %6, %3 : vector<8x128xf32>
    %cst_6 = arith.constant 0.223143548 : f32
    %16 = vector.broadcast %cst_6 : f32 to vector<8x128xf32>
    %17 = arith.mulf %16, %15 : vector<8x128xf32>
    %18 = arith.addf %3, %17 : vector<8x128xf32>
    %19 = vector.broadcast %14 : f32 to vector<8x128xf32>
    %20 = arith.mulf %19, %18 : vector<8x128xf32>
    %21 = arith.addf %13, %20 : vector<8x128xf32>
    %22 = arith.index_cast %c0_i32_2 : i32 to index
    %c0_7 = arith.constant 0 : index
    %c0_8 = arith.constant 0 : index
    %23 = vector.load %arg2[%22, %c0_7, %c0_8] : memref<8x8x128xf32, #tpu.memory_space<vmem>>, vector<1x8x128xf32>
    %24 = vector.shape_cast %23 : vector<1x8x128xf32> to vector<8x128xf32>
    %25 = vector.shape_cast %21 : vector<8x128xf32> to vector<1x8x128xf32>
    tpu.vector_store %arg2[%22, %c0_7, %c0_8], %25 {strides = array<i32>} : memref<8x8x128xf32, #tpu.memory_space<vmem>>, vector<1x8x128xf32>,
    %c1_i32 = arith.constant 1 : i32
    %26 = arith.index_cast %c1_i32 : i32 to index
    %c0_9 = arith.constant 0 : index
    %c0_10 = arith.constant 0 : index
    %27 = vector.load %arg1[%26, %c0_9, %c0_10] : memref<8x8x128xf32, #tpu.memory_space<vmem>>, vector<1x8x128xf32>
    %28 = vector.shape_cast %27 : vector<1x8x128xf32> to vector<8x128xf32>
    %c8_i32_11 = arith.constant 8 : i32
    %29 = arith.muli %arg0, %c8_i32_11 : i32
    %30 = arith.addi %29, %c1_i32 : i32
    %c0_i32_12 = arith.constant 0 : i32
    %31 = arith.cmpi eq, %30, %c0_i32_12 : i32
    %32 = arith.extui %31 : i1 to i32
    %33 = arith.sitofp %32 : i32 to f32
    %34 = vector.broadcast %33 : f32 to vector<8x128xf32>
    %35 = arith.mulf %34, %28 : vector<8x128xf32>
    %cst_13 = arith.constant 1.000000e+00 : f32
    %36 = arith.subf %cst_13, %33 : f32
    %37 = arith.subf %28, %21 : vector<8x128xf32>
    %cst_14 = arith.constant 0.223143548 : f32
    %38 = vector.broadcast %cst_14 : f32 to vector<8x128xf32>
    %39 = arith.mulf %38, %37 : vector<8x128xf32>
    %40 = arith.addf %21, %39 : vector<8x128xf32>
    %41 = vector.broadcast %36 : f32 to vector<8x128xf32>
    %42 = arith.mulf %41, %40 : vector<8x128xf32>
    %43 = arith.addf %35, %42 : vector<8x128xf32>
    %44 = arith.index_cast %c1_i32 : i32 to index
    %c0_15 = arith.constant 0 : index
    %c0_16 = arith.constant 0 : index
    %45 = vector.load %arg2[%44, %c0_15, %c0_16] : memref<8x8x128xf32, #tpu.memory_space<vmem>>, vector<1x8x128xf32>
    %46 = vector.shape_cast %45 : vector<1x8x128xf32> to vector<8x128xf32>
    %47 = vector.shape_cast %43 : vector<8x128xf32> to vector<1x8x128xf32>
    tpu.vector_store %arg2[%44, %c0_15, %c0_16], %47 {strides = array<i32>} : memref<8x8x128xf32, #tpu.memory_space<vmem>>, vector<1x8x128xf32>,
    %c2_i32 = arith.constant 2 : i32
    %48 = arith.index_cast %c2_i32 : i32 to index
    %c0_17 = arith.constant 0 : index
    %c0_18 = arith.constant 0 : index
    %49 = vector.load %arg1[%48, %c0_17, %c0_18] : memref<8x8x128xf32, #tpu.memory_space<vmem>>, vector<1x8x128xf32>
    %50 = vector.shape_cast %49 : vector<1x8x128xf32> to vector<8x128xf32>
    %c8_i32_19 = arith.constant 8 : i32
    %51 = arith.muli %arg0, %c8_i32_19 : i32
    %52 = arith.addi %51, %c2_i32 : i32
    %c0_i32_20 = arith.constant 0 : i32
    %53 = arith.cmpi eq, %52, %c0_i32_20 : i32
    %54 = arith.extui %53 : i1 to i32
    %55 = arith.sitofp %54 : i32 to f32
    %56 = vector.broadcast %55 : f32 to vector<8x128xf32>
    %57 = arith.mulf %56, %50 : vector<8x128xf32>
    %cst_21 = arith.constant 1.000000e+00 : f32
    %58 = arith.subf %cst_21, %55 : f32
    %59 = arith.subf %50, %43 : vector<8x128xf32>
    %cst_22 = arith.constant 0.223143548 : f32
    %60 = vector.broadcast %cst_22 : f32 to vector<8x128xf32>
    %61 = arith.mulf %60, %59 : vector<8x128xf32>
    %62 = arith.addf %43, %61 : vector<8x128xf32>
    %63 = vector.broadcast %58 : f32 to vector<8x128xf32>
    %64 = arith.mulf %63, %62 : vector<8x128xf32>
    %65 = arith.addf %57, %64 : vector<8x128xf32>
    %66 = arith.index_cast %c2_i32 : i32 to index
    %c0_23 = arith.constant 0 : index
    %c0_24 = arith.constant 0 : index
    %67 = vector.load %arg2[%66, %c0_23, %c0_24] : memref<8x8x128xf32, #tpu.memory_space<vmem>>, vector<1x8x128xf32>
    %68 = vector.shape_cast %67 : vector<1x8x128xf32> to vector<8x128xf32>
    %69 = vector.shape_cast %65 : vector<8x128xf32> to vector<1x8x128xf32>
    tpu.vector_store %arg2[%66, %c0_23, %c0_24], %69 {strides = array<i32>} : memref<8x8x128xf32, #tpu.memory_space<vmem>>, vector<1x8x128xf32>,
    %c3_i32 = arith.constant 3 : i32
    %70 = arith.index_cast %c3_i32 : i32 to index
    %c0_25 = arith.constant 0 : index
    %c0_26 = arith.constant 0 : index
    %71 = vector.load %arg1[%70, %c0_25, %c0_26] : memref<8x8x128xf32, #tpu.memory_space<vmem>>, vector<1x8x128xf32>
    %72 = vector.shape_cast %71 : vector<1x8x128xf32> to vector<8x128xf32>
    %c8_i32_27 = arith.constant 8 : i32
    %73 = arith.muli %arg0, %c8_i32_27 : i32
    %74 = arith.addi %73, %c3_i32 : i32
    %c0_i32_28 = arith.constant 0 : i32
    %75 = arith.cmpi eq, %74, %c0_i32_28 : i32
    %76 = arith.extui %75 : i1 to i32
    %77 = arith.sitofp %76 : i32 to f32
    %78 = vector.broadcast %77 : f32 to vector<8x128xf32>
    %79 = arith.mulf %78, %72 : vector<8x128xf32>
    %cst_29 = arith.constant 1.000000e+00 : f32
    %80 = arith.subf %cst_29, %77 : f32
    %81 = arith.subf %72, %65 : vector<8x128xf32>
    %cst_30 = arith.constant 0.223143548 : f32
    %82 = vector.broadcast %cst_30 : f32 to vector<8x128xf32>
    %83 = arith.mulf %82, %81 : vector<8x128xf32>
    %84 = arith.addf %65, %83 : vector<8x128xf32>
    %85 = vector.broadcast %80 : f32 to vector<8x128xf32>
    %86 = arith.mulf %85, %84 : vector<8x128xf32>
    %87 = arith.addf %79, %86 : vector<8x128xf32>
    %88 = arith.index_cast %c3_i32 : i32 to index
    %c0_31 = arith.constant 0 : index
    %c0_32 = arith.constant 0 : index
    %89 = vector.load %arg2[%88, %c0_31, %c0_32] : memref<8x8x128xf32, #tpu.memory_space<vmem>>, vector<1x8x128xf32>
    %90 = vector.shape_cast %89 : vector<1x8x128xf32> to vector<8x128xf32>
    %91 = vector.shape_cast %87 : vector<8x128xf32> to vector<1x8x128xf32>
    tpu.vector_store %arg2[%88, %c0_31, %c0_32], %91 {strides = array<i32>} : memref<8x8x128xf32, #tpu.memory_space<vmem>>, vector<1x8x128xf32>,
    %c4_i32 = arith.constant 4 : i32
    %92 = arith.index_cast %c4_i32 : i32 to index
    %c0_33 = arith.constant 0 : index
    %c0_34 = arith.constant 0 : index
    %93 = vector.load %arg1[%92, %c0_33, %c0_34] : memref<8x8x128xf32, #tpu.memory_space<vmem>>, vector<1x8x128xf32>
    %94 = vector.shape_cast %93 : vector<1x8x128xf32> to vector<8x128xf32>
    %c8_i32_35 = arith.constant 8 : i32
    %95 = arith.muli %arg0, %c8_i32_35 : i32
    %96 = arith.addi %95, %c4_i32 : i32
    %c0_i32_36 = arith.constant 0 : i32
    %97 = arith.cmpi eq, %96, %c0_i32_36 : i32
    %98 = arith.extui %97 : i1 to i32
    %99 = arith.sitofp %98 : i32 to f32
    %100 = vector.broadcast %99 : f32 to vector<8x128xf32>
    %101 = arith.mulf %100, %94 : vector<8x128xf32>
    %cst_37 = arith.constant 1.000000e+00 : f32
    %102 = arith.subf %cst_37, %99 : f32
    %103 = arith.subf %94, %87 : vector<8x128xf32>
    %cst_38 = arith.constant 0.223143548 : f32
    %104 = vector.broadcast %cst_38 : f32 to vector<8x128xf32>
    %105 = arith.mulf %104, %103 : vector<8x128xf32>
    %106 = arith.addf %87, %105 : vector<8x128xf32>
    %107 = vector.broadcast %102 : f32 to vector<8x128xf32>
    %108 = arith.mulf %107, %106 : vector<8x128xf32>
    %109 = arith.addf %101, %108 : vector<8x128xf32>
    %110 = arith.index_cast %c4_i32 : i32 to index
    %c0_39 = arith.constant 0 : index
    %c0_40 = arith.constant 0 : index
    %111 = vector.load %arg2[%110, %c0_39, %c0_40] : memref<8x8x128xf32, #tpu.memory_space<vmem>>, vector<1x8x128xf32>
    %112 = vector.shape_cast %111 : vector<1x8x128xf32> to vector<8x128xf32>
    %113 = vector.shape_cast %109 : vector<8x128xf32> to vector<1x8x128xf32>
    tpu.vector_store %arg2[%110, %c0_39, %c0_40], %113 {strides = array<i32>} : memref<8x8x128xf32, #tpu.memory_space<vmem>>, vector<1x8x128xf32>,
    %c5_i32 = arith.constant 5 : i32
    %114 = arith.index_cast %c5_i32 : i32 to index
    %c0_41 = arith.constant 0 : index
    %c0_42 = arith.constant 0 : index
    %115 = vector.load %arg1[%114, %c0_41, %c0_42] : memref<8x8x128xf32, #tpu.memory_space<vmem>>, vector<1x8x128xf32>
    %116 = vector.shape_cast %115 : vector<1x8x128xf32> to vector<8x128xf32>
    %c8_i32_43 = arith.constant 8 : i32
    %117 = arith.muli %arg0, %c8_i32_43 : i32
    %118 = arith.addi %117, %c5_i32 : i32
    %c0_i32_44 = arith.constant 0 : i32
    %119 = arith.cmpi eq, %118, %c0_i32_44 : i32
    %120 = arith.extui %119 : i1 to i32
    %121 = arith.sitofp %120 : i32 to f32
    %122 = vector.broadcast %121 : f32 to vector<8x128xf32>
    %123 = arith.mulf %122, %116 : vector<8x128xf32>
    %cst_45 = arith.constant 1.000000e+00 : f32
    %124 = arith.subf %cst_45, %121 : f32
    %125 = arith.subf %116, %109 : vector<8x128xf32>
    %cst_46 = arith.constant 0.223143548 : f32
    %126 = vector.broadcast %cst_46 : f32 to vector<8x128xf32>
    %127 = arith.mulf %126, %125 : vector<8x128xf32>
    %128 = arith.addf %109, %127 : vector<8x128xf32>
    %129 = vector.broadcast %124 : f32 to vector<8x128xf32>
    %130 = arith.mulf %129, %128 : vector<8x128xf32>
    %131 = arith.addf %123, %130 : vector<8x128xf32>
    %132 = arith.index_cast %c5_i32 : i32 to index
    %c0_47 = arith.constant 0 : index
    %c0_48 = arith.constant 0 : index
    %133 = vector.load %arg2[%132, %c0_47, %c0_48] : memref<8x8x128xf32, #tpu.memory_space<vmem>>, vector<1x8x128xf32>
    %134 = vector.shape_cast %133 : vector<1x8x128xf32> to vector<8x128xf32>
    %135 = vector.shape_cast %131 : vector<8x128xf32> to vector<1x8x128xf32>
    tpu.vector_store %arg2[%132, %c0_47, %c0_48], %135 {strides = array<i32>} : memref<8x8x128xf32, #tpu.memory_space<vmem>>, vector<1x8x128xf32>,
    %c6_i32 = arith.constant 6 : i32
    %136 = arith.index_cast %c6_i32 : i32 to index
    %c0_49 = arith.constant 0 : index
    %c0_50 = arith.constant 0 : index
    %137 = vector.load %arg1[%136, %c0_49, %c0_50] : memref<8x8x128xf32, #tpu.memory_space<vmem>>, vector<1x8x128xf32>
    %138 = vector.shape_cast %137 : vector<1x8x128xf32> to vector<8x128xf32>
    %c8_i32_51 = arith.constant 8 : i32
    %139 = arith.muli %arg0, %c8_i32_51 : i32
    %140 = arith.addi %139, %c6_i32 : i32
    %c0_i32_52 = arith.constant 0 : i32
    %141 = arith.cmpi eq, %140, %c0_i32_52 : i32
    %142 = arith.extui %141 : i1 to i32
    %143 = arith.sitofp %142 : i32 to f32
    %144 = vector.broadcast %143 : f32 to vector<8x128xf32>
    %145 = arith.mulf %144, %138 : vector<8x128xf32>
    %cst_53 = arith.constant 1.000000e+00 : f32
    %146 = arith.subf %cst_53, %143 : f32
    %147 = arith.subf %138, %131 : vector<8x128xf32>
    %cst_54 = arith.constant 0.223143548 : f32
    %148 = vector.broadcast %cst_54 : f32 to vector<8x128xf32>
    %149 = arith.mulf %148, %147 : vector<8x128xf32>
    %150 = arith.addf %131, %149 : vector<8x128xf32>
    %151 = vector.broadcast %146 : f32 to vector<8x128xf32>
    %152 = arith.mulf %151, %150 : vector<8x128xf32>
    %153 = arith.addf %145, %152 : vector<8x128xf32>
    %154 = arith.index_cast %c6_i32 : i32 to index
    %c0_55 = arith.constant 0 : index
    %c0_56 = arith.constant 0 : index
    %155 = vector.load %arg2[%154, %c0_55, %c0_56] : memref<8x8x128xf32, #tpu.memory_space<vmem>>, vector<1x8x128xf32>
    %156 = vector.shape_cast %155 : vector<1x8x128xf32> to vector<8x128xf32>
    %157 = vector.shape_cast %153 : vector<8x128xf32> to vector<1x8x128xf32>
    tpu.vector_store %arg2[%154, %c0_55, %c0_56], %157 {strides = array<i32>} : memref<8x8x128xf32, #tpu.memory_space<vmem>>, vector<1x8x128xf32>,
    %c7_i32 = arith.constant 7 : i32
    %158 = arith.index_cast %c7_i32 : i32 to index
    %c0_57 = arith.constant 0 : index
    %c0_58 = arith.constant 0 : index
    %159 = vector.load %arg1[%158, %c0_57, %c0_58] : memref<8x8x128xf32, #tpu.memory_space<vmem>>, vector<1x8x128xf32>
    %160 = vector.shape_cast %159 : vector<1x8x128xf32> to vector<8x128xf32>
    %c8_i32_59 = arith.constant 8 : i32
    %161 = arith.muli %arg0, %c8_i32_59 : i32
    %162 = arith.addi %161, %c7_i32 : i32
    %c0_i32_60 = arith.constant 0 : i32
    %163 = arith.cmpi eq, %162, %c0_i32_60 : i32
    %164 = arith.extui %163 : i1 to i32
    %165 = arith.sitofp %164 : i32 to f32
    %166 = vector.broadcast %165 : f32 to vector<8x128xf32>
    %167 = arith.mulf %166, %160 : vector<8x128xf32>
    %cst_61 = arith.constant 1.000000e+00 : f32
    %168 = arith.subf %cst_61, %165 : f32
    %169 = arith.subf %160, %153 : vector<8x128xf32>
    %cst_62 = arith.constant 0.223143548 : f32
    %170 = vector.broadcast %cst_62 : f32 to vector<8x128xf32>
    %171 = arith.mulf %170, %169 : vector<8x128xf32>
    %172 = arith.addf %153, %171 : vector<8x128xf32>
    %173 = vector.broadcast %168 : f32 to vector<8x128xf32>
    %174 = arith.mulf %173, %172 : vector<8x128xf32>
    %175 = arith.addf %167, %174 : vector<8x128xf32>
    %176 = arith.index_cast %c7_i32 : i32 to index
    %c0_63 = arith.constant 0 : index
    %c0_64 = arith.constant 0 : index
    %177 = vector.load %arg2[%176, %c0_63, %c0_64] : memref<8x8x128xf32, #tpu.memory_space<vmem>>, vector<1x8x128xf32>
    %178 = vector.shape_cast %177 : vector<1x8x128xf32> to vector<8x128xf32>
    %179 = vector.shape_cast %175 : vector<8x128xf32> to vector<1x8x128xf32>
    tpu.vector_store %arg2[%176, %c0_63, %c0_64], %179 {strides = array<i32>} : memref<8x8x128xf32, #tpu.memory_space<vmem>>, vector<1x8x128xf32>,
    %c8_i32_65 = arith.constant 8 : i32
    %c0_66 = arith.constant 0 : index
    %c0_67 = arith.constant 0 : index
    %180 = vector.load %arg3[%c0_66, %c0_67] : memref<8x128xf32, #tpu.memory_space<vmem>>, vector<8x128xf32>
    tpu.vector_store %arg3[%c0_66, %c0_67], %175 {strides = array<i32>} : memref<8x128xf32, #tpu.memory_space<vmem>>, vector<8x128xf32>,
    return
  }
  func.func @transform_0(%arg0: i32) -> (i32, i32, i32) {
    %c0_i32 = arith.constant 0 : i32
    %c0_i32_0 = arith.constant 0 : i32
    %c0_i32_1 = arith.constant 0 : i32
    return %arg0, %c0_i32, %c0_i32_0 : i32, i32, i32
  }
  func.func @transform_1(%arg0: i32) -> (i32, i32, i32) {
    %c0_i32 = arith.constant 0 : i32
    %c0_i32_0 = arith.constant 0 : i32
    %c0_i32_1 = arith.constant 0 : i32
    return %arg0, %c0_i32, %c0_i32_0 : i32, i32, i32
  }
}

module attributes {stable_mosaic.version = 11 : i64} {
  func.func @_lif_recurrent_kernel(%arg0: i32, %arg1: memref<8x8x128xf32, #tpu.memory_space<vmem>>, %arg2: memref<128x128xf32, #tpu.memory_space<vmem>>, %arg3: memref<8x8x128xf32, #tpu.memory_space<vmem>>, %arg4: memref<8x128xf32, #tpu.memory_space<vmem>>, %arg5: memref<8x128xf32, #tpu.memory_space<vmem>>, %arg6: memref<8x128xf32, #tpu.memory_space<vmem>>, %arg7: memref<8x128xf32, #tpu.memory_space<vmem>>, %arg8: memref<8x128xf32, #tpu.memory_space<vmem>>, %arg9: memref<8x128xf32, #tpu.memory_space<vmem>>) attributes {dimension_semantics = [#tpu.dimension_semantics<arbitrary>], iteration_bounds = array<i64: 1>, scalar_prefetch = 0 : i64, scratch_operands = 3 : i64, tpu.core_type = #tpu.core_type<tc>, window_params = [{transform_indices = @transform_0, window_bounds = array<i64: 8, 8, 128>}, {pipeline_mode = #tpu.pipeline_mode<synchronous>, transform_indices = @transform_1, window_bounds = array<i64: 128, 128>}, {transform_indices = @transform_2, window_bounds = array<i64: 8, 8, 128>}, {pipeline_mode = #tpu.pipeline_mode<synchronous>, transform_indices = @transform_3, window_bounds = array<i64: 8, 128>}, {pipeline_mode = #tpu.pipeline_mode<synchronous>, transform_indices = @transform_4, window_bounds = array<i64: 8, 128>}, {pipeline_mode = #tpu.pipeline_mode<synchronous>, transform_indices = @transform_5, window_bounds = array<i64: 8, 128>}]} {
    %c0_i32 = arith.constant 0 : i32
    %0 = arith.cmpi eq, %arg0, %c0_i32 : i32
    %1 = arith.extui %0 : i1 to i32
    %c0_i32_0 = arith.constant 0 : i32
    %2 = arith.cmpi ne, %1, %c0_i32_0 : i32
    scf.if %2 {
      %cst_152 = arith.constant 0.000000e+00 : f32
      %445 = vector.broadcast %cst_152 : f32 to vector<8x128xf32>
      %c0_153 = arith.constant 0 : index
      %c0_154 = arith.constant 0 : index
      %446 = vector.load %arg7[%c0_153, %c0_154] : memref<8x128xf32, #tpu.memory_space<vmem>>, vector<8x128xf32>
      tpu.vector_store %arg7[%c0_153, %c0_154], %445 {strides = array<i32>} : memref<8x128xf32, #tpu.memory_space<vmem>>, vector<8x128xf32>,
      %cst_155 = arith.constant 0.000000e+00 : f32
      %447 = vector.broadcast %cst_155 : f32 to vector<8x128xf32>
      %c0_156 = arith.constant 0 : index
      %c0_157 = arith.constant 0 : index
      %448 = vector.load %arg8[%c0_156, %c0_157] : memref<8x128xf32, #tpu.memory_space<vmem>>, vector<8x128xf32>
      tpu.vector_store %arg8[%c0_156, %c0_157], %447 {strides = array<i32>} : memref<8x128xf32, #tpu.memory_space<vmem>>, vector<8x128xf32>,
      %cst_158 = arith.constant 0.000000e+00 : f32
      %449 = vector.broadcast %cst_158 : f32 to vector<8x128xf32>
      %c0_159 = arith.constant 0 : index
      %c0_160 = arith.constant 0 : index
      %450 = vector.load %arg9[%c0_159, %c0_160] : memref<8x128xf32, #tpu.memory_space<vmem>>, vector<8x128xf32>
      tpu.vector_store %arg9[%c0_159, %c0_160], %449 {strides = array<i32>} : memref<8x128xf32, #tpu.memory_space<vmem>>, vector<8x128xf32>,
    } else {
    }
    %c0 = arith.constant 0 : index
    %c0_1 = arith.constant 0 : index
    %3 = vector.load %arg2[%c0, %c0_1] : memref<128x128xf32, #tpu.memory_space<vmem>>, vector<128x128xf32>
    %c0_2 = arith.constant 0 : index
    %c0_3 = arith.constant 0 : index
    %4 = vector.load %arg7[%c0_2, %c0_3] : memref<8x128xf32, #tpu.memory_space<vmem>>, vector<8x128xf32>
    %c0_4 = arith.constant 0 : index
    %c0_5 = arith.constant 0 : index
    %5 = vector.load %arg8[%c0_4, %c0_5] : memref<8x128xf32, #tpu.memory_space<vmem>>, vector<8x128xf32>
    %c0_6 = arith.constant 0 : index
    %c0_7 = arith.constant 0 : index
    %6 = vector.load %arg9[%c0_6, %c0_7] : memref<8x128xf32, #tpu.memory_space<vmem>>, vector<8x128xf32>
    %c0_i32_8 = arith.constant 0 : i32
    %cst = arith.constant 0.000000e+00 : f32
    %7 = vector.broadcast %cst : f32 to vector<8x128xf32>
    %8 = arith.subf %7, %5 : vector<8x128xf32>
    %9 = arith.addf %8, %6 : vector<8x128xf32>
    %cst_9 = arith.constant 1.000000e-01 : f32
    %10 = vector.broadcast %cst_9 : f32 to vector<8x128xf32>
    %11 = arith.mulf %10, %9 : vector<8x128xf32>
    %12 = arith.addf %5, %11 : vector<8x128xf32>
    %cst_10 = arith.constant 2.000000e-01 : f32
    %13 = vector.broadcast %cst_10 : f32 to vector<8x128xf32>
    %14 = arith.mulf %13, %6 : vector<8x128xf32>
    %15 = arith.subf %6, %14 : vector<8x128xf32>
    %cst_11 = arith.constant 1.000000e+00 : f32
    %16 = vector.broadcast %cst_11 : f32 to vector<8x128xf32>
    %17 = arith.subf %12, %16 : vector<8x128xf32>
    %cst_12 = arith.constant 0.000000e+00 : f32
    %18 = vector.broadcast %cst_12 : f32 to vector<8x128xf32>
    %19 = arith.cmpf ogt, %17, %18 : vector<8x128xf32>
    %20 = arith.extui %19 : vector<8x128xi1> to vector<8x128xi32>
    %21 = arith.sitofp %20 : vector<8x128xi32> to vector<8x128xf32>
    %cst_13 = arith.constant 1.000000e+00 : f32
    %22 = vector.broadcast %cst_13 : f32 to vector<8x128xf32>
    %23 = arith.subf %22, %21 : vector<8x128xf32>
    %24 = arith.mulf %23, %12 : vector<8x128xf32>
    %cst_14 = arith.constant 0.000000e+00 : f32
    %25 = vector.broadcast %cst_14 : f32 to vector<8x128xf32>
    %26 = arith.mulf %21, %25 : vector<8x128xf32>
    %27 = arith.addf %24, %26 : vector<8x128xf32>
    %28 = arith.index_cast %c0_i32_8 : i32 to index
    %c0_15 = arith.constant 0 : index
    %c0_16 = arith.constant 0 : index
    %29 = vector.load %arg1[%28, %c0_15, %c0_16] : memref<8x8x128xf32, #tpu.memory_space<vmem>>, vector<1x8x128xf32>
    %30 = vector.shape_cast %29 : vector<1x8x128xf32> to vector<8x128xf32>
    %31 = arith.addf %15, %30 : vector<8x128xf32>
    %cst_17 = arith.constant dense<0.000000e+00> : vector<8x128xf32>
    %32 = tpu.matmul %4, %3, %cst_17 {dimension_numbers = #tpu.dot_dimension_numbers<[1], [0], [0], [1], [0, 0, 1, 1], [], []>} : vector<8x128xf32>, vector<128x128xf32>, vector<8x128xf32> -> vector<8x128xf32>
    %33 = arith.addf %31, %32 : vector<8x128xf32>
    %34 = arith.index_cast %c0_i32_8 : i32 to index
    %c0_18 = arith.constant 0 : index
    %c0_19 = arith.constant 0 : index
    %35 = vector.load %arg3[%34, %c0_18, %c0_19] : memref<8x8x128xf32, #tpu.memory_space<vmem>>, vector<1x8x128xf32>
    %36 = vector.shape_cast %35 : vector<1x8x128xf32> to vector<8x128xf32>
    %37 = vector.shape_cast %21 : vector<8x128xf32> to vector<1x8x128xf32>
    tpu.vector_store %arg3[%34, %c0_18, %c0_19], %37 {strides = array<i32>} : memref<8x8x128xf32, #tpu.memory_space<vmem>>, vector<1x8x128xf32>,
    %c8_i32 = arith.constant 8 : i32
    %38 = arith.muli %arg0, %c8_i32 : i32
    %39 = arith.addi %38, %c0_i32_8 : i32
    %c8_i32_20 = arith.constant 8 : i32
    %40 = arith.cmpi slt, %39, %c8_i32_20 : i32
    %41 = arith.extui %40 : i1 to i32
    %42 = arith.sitofp %41 : i32 to f32
    %43 = vector.broadcast %42 : f32 to vector<8x128xf32>
    %44 = arith.mulf %43, %21 : vector<8x128xf32>
    %cst_21 = arith.constant 1.000000e+00 : f32
    %45 = arith.subf %cst_21, %42 : f32
    %46 = vector.broadcast %45 : f32 to vector<8x128xf32>
    %47 = arith.mulf %46, %4 : vector<8x128xf32>
    %48 = arith.addf %44, %47 : vector<8x128xf32>
    %49 = vector.broadcast %42 : f32 to vector<8x128xf32>
    %50 = arith.mulf %49, %27 : vector<8x128xf32>
    %cst_22 = arith.constant 1.000000e+00 : f32
    %51 = arith.subf %cst_22, %42 : f32
    %52 = vector.broadcast %51 : f32 to vector<8x128xf32>
    %53 = arith.mulf %52, %5 : vector<8x128xf32>
    %54 = arith.addf %50, %53 : vector<8x128xf32>
    %55 = vector.broadcast %42 : f32 to vector<8x128xf32>
    %56 = arith.mulf %55, %33 : vector<8x128xf32>
    %cst_23 = arith.constant 1.000000e+00 : f32
    %57 = arith.subf %cst_23, %42 : f32
    %58 = vector.broadcast %57 : f32 to vector<8x128xf32>
    %59 = arith.mulf %58, %6 : vector<8x128xf32>
    %60 = arith.addf %56, %59 : vector<8x128xf32>
    %c1_i32 = arith.constant 1 : i32
    %cst_24 = arith.constant 0.000000e+00 : f32
    %61 = vector.broadcast %cst_24 : f32 to vector<8x128xf32>
    %62 = arith.subf %61, %54 : vector<8x128xf32>
    %63 = arith.addf %62, %60 : vector<8x128xf32>
    %cst_25 = arith.constant 1.000000e-01 : f32
    %64 = vector.broadcast %cst_25 : f32 to vector<8x128xf32>
    %65 = arith.mulf %64, %63 : vector<8x128xf32>
    %66 = arith.addf %54, %65 : vector<8x128xf32>
    %cst_26 = arith.constant 2.000000e-01 : f32
    %67 = vector.broadcast %cst_26 : f32 to vector<8x128xf32>
    %68 = arith.mulf %67, %60 : vector<8x128xf32>
    %69 = arith.subf %60, %68 : vector<8x128xf32>
    %cst_27 = arith.constant 1.000000e+00 : f32
    %70 = vector.broadcast %cst_27 : f32 to vector<8x128xf32>
    %71 = arith.subf %66, %70 : vector<8x128xf32>
    %cst_28 = arith.constant 0.000000e+00 : f32
    %72 = vector.broadcast %cst_28 : f32 to vector<8x128xf32>
    %73 = arith.cmpf ogt, %71, %72 : vector<8x128xf32>
    %74 = arith.extui %73 : vector<8x128xi1> to vector<8x128xi32>
    %75 = arith.sitofp %74 : vector<8x128xi32> to vector<8x128xf32>
    %cst_29 = arith.constant 1.000000e+00 : f32
    %76 = vector.broadcast %cst_29 : f32 to vector<8x128xf32>
    %77 = arith.subf %76, %75 : vector<8x128xf32>
    %78 = arith.mulf %77, %66 : vector<8x128xf32>
    %cst_30 = arith.constant 0.000000e+00 : f32
    %79 = vector.broadcast %cst_30 : f32 to vector<8x128xf32>
    %80 = arith.mulf %75, %79 : vector<8x128xf32>
    %81 = arith.addf %78, %80 : vector<8x128xf32>
    %82 = arith.index_cast %c1_i32 : i32 to index
    %c0_31 = arith.constant 0 : index
    %c0_32 = arith.constant 0 : index
    %83 = vector.load %arg1[%82, %c0_31, %c0_32] : memref<8x8x128xf32, #tpu.memory_space<vmem>>, vector<1x8x128xf32>
    %84 = vector.shape_cast %83 : vector<1x8x128xf32> to vector<8x128xf32>
    %85 = arith.addf %69, %84 : vector<8x128xf32>
    %cst_33 = arith.constant dense<0.000000e+00> : vector<8x128xf32>
    %86 = tpu.matmul %48, %3, %cst_33 {dimension_numbers = #tpu.dot_dimension_numbers<[1], [0], [0], [1], [0, 0, 1, 1], [], []>} : vector<8x128xf32>, vector<128x128xf32>, vector<8x128xf32> -> vector<8x128xf32>
    %87 = arith.addf %85, %86 : vector<8x128xf32>
    %88 = arith.index_cast %c1_i32 : i32 to index
    %c0_34 = arith.constant 0 : index
    %c0_35 = arith.constant 0 : index
    %89 = vector.load %arg3[%88, %c0_34, %c0_35] : memref<8x8x128xf32, #tpu.memory_space<vmem>>, vector<1x8x128xf32>
    %90 = vector.shape_cast %89 : vector<1x8x128xf32> to vector<8x128xf32>
    %91 = vector.shape_cast %75 : vector<8x128xf32> to vector<1x8x128xf32>
    tpu.vector_store %arg3[%88, %c0_34, %c0_35], %91 {strides = array<i32>} : memref<8x8x128xf32, #tpu.memory_space<vmem>>, vector<1x8x128xf32>,
    %c8_i32_36 = arith.constant 8 : i32
    %92 = arith.muli %arg0, %c8_i32_36 : i32
    %93 = arith.addi %92, %c1_i32 : i32
    %c8_i32_37 = arith.constant 8 : i32
    %94 = arith.cmpi slt, %93, %c8_i32_37 : i32
    %95 = arith.extui %94 : i1 to i32
    %96 = arith.sitofp %95 : i32 to f32
    %97 = vector.broadcast %96 : f32 to vector<8x128xf32>
    %98 = arith.mulf %97, %75 : vector<8x128xf32>
    %cst_38 = arith.constant 1.000000e+00 : f32
    %99 = arith.subf %cst_38, %96 : f32
    %100 = vector.broadcast %99 : f32 to vector<8x128xf32>
    %101 = arith.mulf %100, %48 : vector<8x128xf32>
    %102 = arith.addf %98, %101 : vector<8x128xf32>
    %103 = vector.broadcast %96 : f32 to vector<8x128xf32>
    %104 = arith.mulf %103, %81 : vector<8x128xf32>
    %cst_39 = arith.constant 1.000000e+00 : f32
    %105 = arith.subf %cst_39, %96 : f32
    %106 = vector.broadcast %105 : f32 to vector<8x128xf32>
    %107 = arith.mulf %106, %54 : vector<8x128xf32>
    %108 = arith.addf %104, %107 : vector<8x128xf32>
    %109 = vector.broadcast %96 : f32 to vector<8x128xf32>
    %110 = arith.mulf %109, %87 : vector<8x128xf32>
    %cst_40 = arith.constant 1.000000e+00 : f32
    %111 = arith.subf %cst_40, %96 : f32
    %112 = vector.broadcast %111 : f32 to vector<8x128xf32>
    %113 = arith.mulf %112, %60 : vector<8x128xf32>
    %114 = arith.addf %110, %113 : vector<8x128xf32>
    %c2_i32 = arith.constant 2 : i32
    %cst_41 = arith.constant 0.000000e+00 : f32
    %115 = vector.broadcast %cst_41 : f32 to vector<8x128xf32>
    %116 = arith.subf %115, %108 : vector<8x128xf32>
    %117 = arith.addf %116, %114 : vector<8x128xf32>
    %cst_42 = arith.constant 1.000000e-01 : f32
    %118 = vector.broadcast %cst_42 : f32 to vector<8x128xf32>
    %119 = arith.mulf %118, %117 : vector<8x128xf32>
    %120 = arith.addf %108, %119 : vector<8x128xf32>
    %cst_43 = arith.constant 2.000000e-01 : f32
    %121 = vector.broadcast %cst_43 : f32 to vector<8x128xf32>
    %122 = arith.mulf %121, %114 : vector<8x128xf32>
    %123 = arith.subf %114, %122 : vector<8x128xf32>
    %cst_44 = arith.constant 1.000000e+00 : f32
    %124 = vector.broadcast %cst_44 : f32 to vector<8x128xf32>
    %125 = arith.subf %120, %124 : vector<8x128xf32>
    %cst_45 = arith.constant 0.000000e+00 : f32
    %126 = vector.broadcast %cst_45 : f32 to vector<8x128xf32>
    %127 = arith.cmpf ogt, %125, %126 : vector<8x128xf32>
    %128 = arith.extui %127 : vector<8x128xi1> to vector<8x128xi32>
    %129 = arith.sitofp %128 : vector<8x128xi32> to vector<8x128xf32>
    %cst_46 = arith.constant 1.000000e+00 : f32
    %130 = vector.broadcast %cst_46 : f32 to vector<8x128xf32>
    %131 = arith.subf %130, %129 : vector<8x128xf32>
    %132 = arith.mulf %131, %120 : vector<8x128xf32>
    %cst_47 = arith.constant 0.000000e+00 : f32
    %133 = vector.broadcast %cst_47 : f32 to vector<8x128xf32>
    %134 = arith.mulf %129, %133 : vector<8x128xf32>
    %135 = arith.addf %132, %134 : vector<8x128xf32>
    %136 = arith.index_cast %c2_i32 : i32 to index
    %c0_48 = arith.constant 0 : index
    %c0_49 = arith.constant 0 : index
    %137 = vector.load %arg1[%136, %c0_48, %c0_49] : memref<8x8x128xf32, #tpu.memory_space<vmem>>, vector<1x8x128xf32>
    %138 = vector.shape_cast %137 : vector<1x8x128xf32> to vector<8x128xf32>
    %139 = arith.addf %123, %138 : vector<8x128xf32>
    %cst_50 = arith.constant dense<0.000000e+00> : vector<8x128xf32>
    %140 = tpu.matmul %102, %3, %cst_50 {dimension_numbers = #tpu.dot_dimension_numbers<[1], [0], [0], [1], [0, 0, 1, 1], [], []>} : vector<8x128xf32>, vector<128x128xf32>, vector<8x128xf32> -> vector<8x128xf32>
    %141 = arith.addf %139, %140 : vector<8x128xf32>
    %142 = arith.index_cast %c2_i32 : i32 to index
    %c0_51 = arith.constant 0 : index
    %c0_52 = arith.constant 0 : index
    %143 = vector.load %arg3[%142, %c0_51, %c0_52] : memref<8x8x128xf32, #tpu.memory_space<vmem>>, vector<1x8x128xf32>
    %144 = vector.shape_cast %143 : vector<1x8x128xf32> to vector<8x128xf32>
    %145 = vector.shape_cast %129 : vector<8x128xf32> to vector<1x8x128xf32>
    tpu.vector_store %arg3[%142, %c0_51, %c0_52], %145 {strides = array<i32>} : memref<8x8x128xf32, #tpu.memory_space<vmem>>, vector<1x8x128xf32>,
    %c8_i32_53 = arith.constant 8 : i32
    %146 = arith.muli %arg0, %c8_i32_53 : i32
    %147 = arith.addi %146, %c2_i32 : i32
    %c8_i32_54 = arith.constant 8 : i32
    %148 = arith.cmpi slt, %147, %c8_i32_54 : i32
    %149 = arith.extui %148 : i1 to i32
    %150 = arith.sitofp %149 : i32 to f32
    %151 = vector.broadcast %150 : f32 to vector<8x128xf32>
    %152 = arith.mulf %151, %129 : vector<8x128xf32>
    %cst_55 = arith.constant 1.000000e+00 : f32
    %153 = arith.subf %cst_55, %150 : f32
    %154 = vector.broadcast %153 : f32 to vector<8x128xf32>
    %155 = arith.mulf %154, %102 : vector<8x128xf32>
    %156 = arith.addf %152, %155 : vector<8x128xf32>
    %157 = vector.broadcast %150 : f32 to vector<8x128xf32>
    %158 = arith.mulf %157, %135 : vector<8x128xf32>
    %cst_56 = arith.constant 1.000000e+00 : f32
    %159 = arith.subf %cst_56, %150 : f32
    %160 = vector.broadcast %159 : f32 to vector<8x128xf32>
    %161 = arith.mulf %160, %108 : vector<8x128xf32>
    %162 = arith.addf %158, %161 : vector<8x128xf32>
    %163 = vector.broadcast %150 : f32 to vector<8x128xf32>
    %164 = arith.mulf %163, %141 : vector<8x128xf32>
    %cst_57 = arith.constant 1.000000e+00 : f32
    %165 = arith.subf %cst_57, %150 : f32
    %166 = vector.broadcast %165 : f32 to vector<8x128xf32>
    %167 = arith.mulf %166, %114 : vector<8x128xf32>
    %168 = arith.addf %164, %167 : vector<8x128xf32>
    %c3_i32 = arith.constant 3 : i32
    %cst_58 = arith.constant 0.000000e+00 : f32
    %169 = vector.broadcast %cst_58 : f32 to vector<8x128xf32>
    %170 = arith.subf %169, %162 : vector<8x128xf32>
    %171 = arith.addf %170, %168 : vector<8x128xf32>
    %cst_59 = arith.constant 1.000000e-01 : f32
    %172 = vector.broadcast %cst_59 : f32 to vector<8x128xf32>
    %173 = arith.mulf %172, %171 : vector<8x128xf32>
    %174 = arith.addf %162, %173 : vector<8x128xf32>
    %cst_60 = arith.constant 2.000000e-01 : f32
    %175 = vector.broadcast %cst_60 : f32 to vector<8x128xf32>
    %176 = arith.mulf %175, %168 : vector<8x128xf32>
    %177 = arith.subf %168, %176 : vector<8x128xf32>
    %cst_61 = arith.constant 1.000000e+00 : f32
    %178 = vector.broadcast %cst_61 : f32 to vector<8x128xf32>
    %179 = arith.subf %174, %178 : vector<8x128xf32>
    %cst_62 = arith.constant 0.000000e+00 : f32
    %180 = vector.broadcast %cst_62 : f32 to vector<8x128xf32>
    %181 = arith.cmpf ogt, %179, %180 : vector<8x128xf32>
    %182 = arith.extui %181 : vector<8x128xi1> to vector<8x128xi32>
    %183 = arith.sitofp %182 : vector<8x128xi32> to vector<8x128xf32>
    %cst_63 = arith.constant 1.000000e+00 : f32
    %184 = vector.broadcast %cst_63 : f32 to vector<8x128xf32>
    %185 = arith.subf %184, %183 : vector<8x128xf32>
    %186 = arith.mulf %185, %174 : vector<8x128xf32>
    %cst_64 = arith.constant 0.000000e+00 : f32
    %187 = vector.broadcast %cst_64 : f32 to vector<8x128xf32>
    %188 = arith.mulf %183, %187 : vector<8x128xf32>
    %189 = arith.addf %186, %188 : vector<8x128xf32>
    %190 = arith.index_cast %c3_i32 : i32 to index
    %c0_65 = arith.constant 0 : index
    %c0_66 = arith.constant 0 : index
    %191 = vector.load %arg1[%190, %c0_65, %c0_66] : memref<8x8x128xf32, #tpu.memory_space<vmem>>, vector<1x8x128xf32>
    %192 = vector.shape_cast %191 : vector<1x8x128xf32> to vector<8x128xf32>
    %193 = arith.addf %177, %192 : vector<8x128xf32>
    %cst_67 = arith.constant dense<0.000000e+00> : vector<8x128xf32>
    %194 = tpu.matmul %156, %3, %cst_67 {dimension_numbers = #tpu.dot_dimension_numbers<[1], [0], [0], [1], [0, 0, 1, 1], [], []>} : vector<8x128xf32>, vector<128x128xf32>, vector<8x128xf32> -> vector<8x128xf32>
    %195 = arith.addf %193, %194 : vector<8x128xf32>
    %196 = arith.index_cast %c3_i32 : i32 to index
    %c0_68 = arith.constant 0 : index
    %c0_69 = arith.constant 0 : index
    %197 = vector.load %arg3[%196, %c0_68, %c0_69] : memref<8x8x128xf32, #tpu.memory_space<vmem>>, vector<1x8x128xf32>
    %198 = vector.shape_cast %197 : vector<1x8x128xf32> to vector<8x128xf32>
    %199 = vector.shape_cast %183 : vector<8x128xf32> to vector<1x8x128xf32>
    tpu.vector_store %arg3[%196, %c0_68, %c0_69], %199 {strides = array<i32>} : memref<8x8x128xf32, #tpu.memory_space<vmem>>, vector<1x8x128xf32>,
    %c8_i32_70 = arith.constant 8 : i32
    %200 = arith.muli %arg0, %c8_i32_70 : i32
    %201 = arith.addi %200, %c3_i32 : i32
    %c8_i32_71 = arith.constant 8 : i32
    %202 = arith.cmpi slt, %201, %c8_i32_71 : i32
    %203 = arith.extui %202 : i1 to i32
    %204 = arith.sitofp %203 : i32 to f32
    %205 = vector.broadcast %204 : f32 to vector<8x128xf32>
    %206 = arith.mulf %205, %183 : vector<8x128xf32>
    %cst_72 = arith.constant 1.000000e+00 : f32
    %207 = arith.subf %cst_72, %204 : f32
    %208 = vector.broadcast %207 : f32 to vector<8x128xf32>
    %209 = arith.mulf %208, %156 : vector<8x128xf32>
    %210 = arith.addf %206, %209 : vector<8x128xf32>
    %211 = vector.broadcast %204 : f32 to vector<8x128xf32>
    %212 = arith.mulf %211, %189 : vector<8x128xf32>
    %cst_73 = arith.constant 1.000000e+00 : f32
    %213 = arith.subf %cst_73, %204 : f32
    %214 = vector.broadcast %213 : f32 to vector<8x128xf32>
    %215 = arith.mulf %214, %162 : vector<8x128xf32>
    %216 = arith.addf %212, %215 : vector<8x128xf32>
    %217 = vector.broadcast %204 : f32 to vector<8x128xf32>
    %218 = arith.mulf %217, %195 : vector<8x128xf32>
    %cst_74 = arith.constant 1.000000e+00 : f32
    %219 = arith.subf %cst_74, %204 : f32
    %220 = vector.broadcast %219 : f32 to vector<8x128xf32>
    %221 = arith.mulf %220, %168 : vector<8x128xf32>
    %222 = arith.addf %218, %221 : vector<8x128xf32>
    %c4_i32 = arith.constant 4 : i32
    %cst_75 = arith.constant 0.000000e+00 : f32
    %223 = vector.broadcast %cst_75 : f32 to vector<8x128xf32>
    %224 = arith.subf %223, %216 : vector<8x128xf32>
    %225 = arith.addf %224, %222 : vector<8x128xf32>
    %cst_76 = arith.constant 1.000000e-01 : f32
    %226 = vector.broadcast %cst_76 : f32 to vector<8x128xf32>
    %227 = arith.mulf %226, %225 : vector<8x128xf32>
    %228 = arith.addf %216, %227 : vector<8x128xf32>
    %cst_77 = arith.constant 2.000000e-01 : f32
    %229 = vector.broadcast %cst_77 : f32 to vector<8x128xf32>
    %230 = arith.mulf %229, %222 : vector<8x128xf32>
    %231 = arith.subf %222, %230 : vector<8x128xf32>
    %cst_78 = arith.constant 1.000000e+00 : f32
    %232 = vector.broadcast %cst_78 : f32 to vector<8x128xf32>
    %233 = arith.subf %228, %232 : vector<8x128xf32>
    %cst_79 = arith.constant 0.000000e+00 : f32
    %234 = vector.broadcast %cst_79 : f32 to vector<8x128xf32>
    %235 = arith.cmpf ogt, %233, %234 : vector<8x128xf32>
    %236 = arith.extui %235 : vector<8x128xi1> to vector<8x128xi32>
    %237 = arith.sitofp %236 : vector<8x128xi32> to vector<8x128xf32>
    %cst_80 = arith.constant 1.000000e+00 : f32
    %238 = vector.broadcast %cst_80 : f32 to vector<8x128xf32>
    %239 = arith.subf %238, %237 : vector<8x128xf32>
    %240 = arith.mulf %239, %228 : vector<8x128xf32>
    %cst_81 = arith.constant 0.000000e+00 : f32
    %241 = vector.broadcast %cst_81 : f32 to vector<8x128xf32>
    %242 = arith.mulf %237, %241 : vector<8x128xf32>
    %243 = arith.addf %240, %242 : vector<8x128xf32>
    %244 = arith.index_cast %c4_i32 : i32 to index
    %c0_82 = arith.constant 0 : index
    %c0_83 = arith.constant 0 : index
    %245 = vector.load %arg1[%244, %c0_82, %c0_83] : memref<8x8x128xf32, #tpu.memory_space<vmem>>, vector<1x8x128xf32>
    %246 = vector.shape_cast %245 : vector<1x8x128xf32> to vector<8x128xf32>
    %247 = arith.addf %231, %246 : vector<8x128xf32>
    %cst_84 = arith.constant dense<0.000000e+00> : vector<8x128xf32>
    %248 = tpu.matmul %210, %3, %cst_84 {dimension_numbers = #tpu.dot_dimension_numbers<[1], [0], [0], [1], [0, 0, 1, 1], [], []>} : vector<8x128xf32>, vector<128x128xf32>, vector<8x128xf32> -> vector<8x128xf32>
    %249 = arith.addf %247, %248 : vector<8x128xf32>
    %250 = arith.index_cast %c4_i32 : i32 to index
    %c0_85 = arith.constant 0 : index
    %c0_86 = arith.constant 0 : index
    %251 = vector.load %arg3[%250, %c0_85, %c0_86] : memref<8x8x128xf32, #tpu.memory_space<vmem>>, vector<1x8x128xf32>
    %252 = vector.shape_cast %251 : vector<1x8x128xf32> to vector<8x128xf32>
    %253 = vector.shape_cast %237 : vector<8x128xf32> to vector<1x8x128xf32>
    tpu.vector_store %arg3[%250, %c0_85, %c0_86], %253 {strides = array<i32>} : memref<8x8x128xf32, #tpu.memory_space<vmem>>, vector<1x8x128xf32>,
    %c8_i32_87 = arith.constant 8 : i32
    %254 = arith.muli %arg0, %c8_i32_87 : i32
    %255 = arith.addi %254, %c4_i32 : i32
    %c8_i32_88 = arith.constant 8 : i32
    %256 = arith.cmpi slt, %255, %c8_i32_88 : i32
    %257 = arith.extui %256 : i1 to i32
    %258 = arith.sitofp %257 : i32 to f32
    %259 = vector.broadcast %258 : f32 to vector<8x128xf32>
    %260 = arith.mulf %259, %237 : vector<8x128xf32>
    %cst_89 = arith.constant 1.000000e+00 : f32
    %261 = arith.subf %cst_89, %258 : f32
    %262 = vector.broadcast %261 : f32 to vector<8x128xf32>
    %263 = arith.mulf %262, %210 : vector<8x128xf32>
    %264 = arith.addf %260, %263 : vector<8x128xf32>
    %265 = vector.broadcast %258 : f32 to vector<8x128xf32>
    %266 = arith.mulf %265, %243 : vector<8x128xf32>
    %cst_90 = arith.constant 1.000000e+00 : f32
    %267 = arith.subf %cst_90, %258 : f32
    %268 = vector.broadcast %267 : f32 to vector<8x128xf32>
    %269 = arith.mulf %268, %216 : vector<8x128xf32>
    %270 = arith.addf %266, %269 : vector<8x128xf32>
    %271 = vector.broadcast %258 : f32 to vector<8x128xf32>
    %272 = arith.mulf %271, %249 : vector<8x128xf32>
    %cst_91 = arith.constant 1.000000e+00 : f32
    %273 = arith.subf %cst_91, %258 : f32
    %274 = vector.broadcast %273 : f32 to vector<8x128xf32>
    %275 = arith.mulf %274, %222 : vector<8x128xf32>
    %276 = arith.addf %272, %275 : vector<8x128xf32>
    %c5_i32 = arith.constant 5 : i32
    %cst_92 = arith.constant 0.000000e+00 : f32
    %277 = vector.broadcast %cst_92 : f32 to vector<8x128xf32>
    %278 = arith.subf %277, %270 : vector<8x128xf32>
    %279 = arith.addf %278, %276 : vector<8x128xf32>
    %cst_93 = arith.constant 1.000000e-01 : f32
    %280 = vector.broadcast %cst_93 : f32 to vector<8x128xf32>
    %281 = arith.mulf %280, %279 : vector<8x128xf32>
    %282 = arith.addf %270, %281 : vector<8x128xf32>
    %cst_94 = arith.constant 2.000000e-01 : f32
    %283 = vector.broadcast %cst_94 : f32 to vector<8x128xf32>
    %284 = arith.mulf %283, %276 : vector<8x128xf32>
    %285 = arith.subf %276, %284 : vector<8x128xf32>
    %cst_95 = arith.constant 1.000000e+00 : f32
    %286 = vector.broadcast %cst_95 : f32 to vector<8x128xf32>
    %287 = arith.subf %282, %286 : vector<8x128xf32>
    %cst_96 = arith.constant 0.000000e+00 : f32
    %288 = vector.broadcast %cst_96 : f32 to vector<8x128xf32>
    %289 = arith.cmpf ogt, %287, %288 : vector<8x128xf32>
    %290 = arith.extui %289 : vector<8x128xi1> to vector<8x128xi32>
    %291 = arith.sitofp %290 : vector<8x128xi32> to vector<8x128xf32>
    %cst_97 = arith.constant 1.000000e+00 : f32
    %292 = vector.broadcast %cst_97 : f32 to vector<8x128xf32>
    %293 = arith.subf %292, %291 : vector<8x128xf32>
    %294 = arith.mulf %293, %282 : vector<8x128xf32>
    %cst_98 = arith.constant 0.000000e+00 : f32
    %295 = vector.broadcast %cst_98 : f32 to vector<8x128xf32>
    %296 = arith.mulf %291, %295 : vector<8x128xf32>
    %297 = arith.addf %294, %296 : vector<8x128xf32>
    %298 = arith.index_cast %c5_i32 : i32 to index
    %c0_99 = arith.constant 0 : index
    %c0_100 = arith.constant 0 : index
    %299 = vector.load %arg1[%298, %c0_99, %c0_100] : memref<8x8x128xf32, #tpu.memory_space<vmem>>, vector<1x8x128xf32>
    %300 = vector.shape_cast %299 : vector<1x8x128xf32> to vector<8x128xf32>
    %301 = arith.addf %285, %300 : vector<8x128xf32>
    %cst_101 = arith.constant dense<0.000000e+00> : vector<8x128xf32>
    %302 = tpu.matmul %264, %3, %cst_101 {dimension_numbers = #tpu.dot_dimension_numbers<[1], [0], [0], [1], [0, 0, 1, 1], [], []>} : vector<8x128xf32>, vector<128x128xf32>, vector<8x128xf32> -> vector<8x128xf32>
    %303 = arith.addf %301, %302 : vector<8x128xf32>
    %304 = arith.index_cast %c5_i32 : i32 to index
    %c0_102 = arith.constant 0 : index
    %c0_103 = arith.constant 0 : index
    %305 = vector.load %arg3[%304, %c0_102, %c0_103] : memref<8x8x128xf32, #tpu.memory_space<vmem>>, vector<1x8x128xf32>
    %306 = vector.shape_cast %305 : vector<1x8x128xf32> to vector<8x128xf32>
    %307 = vector.shape_cast %291 : vector<8x128xf32> to vector<1x8x128xf32>
    tpu.vector_store %arg3[%304, %c0_102, %c0_103], %307 {strides = array<i32>} : memref<8x8x128xf32, #tpu.memory_space<vmem>>, vector<1x8x128xf32>,
    %c8_i32_104 = arith.constant 8 : i32
    %308 = arith.muli %arg0, %c8_i32_104 : i32
    %309 = arith.addi %308, %c5_i32 : i32
    %c8_i32_105 = arith.constant 8 : i32
    %310 = arith.cmpi slt, %309, %c8_i32_105 : i32
    %311 = arith.extui %310 : i1 to i32
    %312 = arith.sitofp %311 : i32 to f32
    %313 = vector.broadcast %312 : f32 to vector<8x128xf32>
    %314 = arith.mulf %313, %291 : vector<8x128xf32>
    %cst_106 = arith.constant 1.000000e+00 : f32
    %315 = arith.subf %cst_106, %312 : f32
    %316 = vector.broadcast %315 : f32 to vector<8x128xf32>
    %317 = arith.mulf %316, %264 : vector<8x128xf32>
    %318 = arith.addf %314, %317 : vector<8x128xf32>
    %319 = vector.broadcast %312 : f32 to vector<8x128xf32>
    %320 = arith.mulf %319, %297 : vector<8x128xf32>
    %cst_107 = arith.constant 1.000000e+00 : f32
    %321 = arith.subf %cst_107, %312 : f32
    %322 = vector.broadcast %321 : f32 to vector<8x128xf32>
    %323 = arith.mulf %322, %270 : vector<8x128xf32>
    %324 = arith.addf %320, %323 : vector<8x128xf32>
    %325 = vector.broadcast %312 : f32 to vector<8x128xf32>
    %326 = arith.mulf %325, %303 : vector<8x128xf32>
    %cst_108 = arith.constant 1.000000e+00 : f32
    %327 = arith.subf %cst_108, %312 : f32
    %328 = vector.broadcast %327 : f32 to vector<8x128xf32>
    %329 = arith.mulf %328, %276 : vector<8x128xf32>
    %330 = arith.addf %326, %329 : vector<8x128xf32>
    %c6_i32 = arith.constant 6 : i32
    %cst_109 = arith.constant 0.000000e+00 : f32
    %331 = vector.broadcast %cst_109 : f32 to vector<8x128xf32>
    %332 = arith.subf %331, %324 : vector<8x128xf32>
    %333 = arith.addf %332, %330 : vector<8x128xf32>
    %cst_110 = arith.constant 1.000000e-01 : f32
    %334 = vector.broadcast %cst_110 : f32 to vector<8x128xf32>
    %335 = arith.mulf %334, %333 : vector<8x128xf32>
    %336 = arith.addf %324, %335 : vector<8x128xf32>
    %cst_111 = arith.constant 2.000000e-01 : f32
    %337 = vector.broadcast %cst_111 : f32 to vector<8x128xf32>
    %338 = arith.mulf %337, %330 : vector<8x128xf32>
    %339 = arith.subf %330, %338 : vector<8x128xf32>
    %cst_112 = arith.constant 1.000000e+00 : f32
    %340 = vector.broadcast %cst_112 : f32 to vector<8x128xf32>
    %341 = arith.subf %336, %340 : vector<8x128xf32>
    %cst_113 = arith.constant 0.000000e+00 : f32
    %342 = vector.broadcast %cst_113 : f32 to vector<8x128xf32>
    %343 = arith.cmpf ogt, %341, %342 : vector<8x128xf32>
    %344 = arith.extui %343 : vector<8x128xi1> to vector<8x128xi32>
    %345 = arith.sitofp %344 : vector<8x128xi32> to vector<8x128xf32>
    %cst_114 = arith.constant 1.000000e+00 : f32
    %346 = vector.broadcast %cst_114 : f32 to vector<8x128xf32>
    %347 = arith.subf %346, %345 : vector<8x128xf32>
    %348 = arith.mulf %347, %336 : vector<8x128xf32>
    %cst_115 = arith.constant 0.000000e+00 : f32
    %349 = vector.broadcast %cst_115 : f32 to vector<8x128xf32>
    %350 = arith.mulf %345, %349 : vector<8x128xf32>
    %351 = arith.addf %348, %350 : vector<8x128xf32>
    %352 = arith.index_cast %c6_i32 : i32 to index
    %c0_116 = arith.constant 0 : index
    %c0_117 = arith.constant 0 : index
    %353 = vector.load %arg1[%352, %c0_116, %c0_117] : memref<8x8x128xf32, #tpu.memory_space<vmem>>, vector<1x8x128xf32>
    %354 = vector.shape_cast %353 : vector<1x8x128xf32> to vector<8x128xf32>
    %355 = arith.addf %339, %354 : vector<8x128xf32>
    %cst_118 = arith.constant dense<0.000000e+00> : vector<8x128xf32>
    %356 = tpu.matmul %318, %3, %cst_118 {dimension_numbers = #tpu.dot_dimension_numbers<[1], [0], [0], [1], [0, 0, 1, 1], [], []>} : vector<8x128xf32>, vector<128x128xf32>, vector<8x128xf32> -> vector<8x128xf32>
    %357 = arith.addf %355, %356 : vector<8x128xf32>
    %358 = arith.index_cast %c6_i32 : i32 to index
    %c0_119 = arith.constant 0 : index
    %c0_120 = arith.constant 0 : index
    %359 = vector.load %arg3[%358, %c0_119, %c0_120] : memref<8x8x128xf32, #tpu.memory_space<vmem>>, vector<1x8x128xf32>
    %360 = vector.shape_cast %359 : vector<1x8x128xf32> to vector<8x128xf32>
    %361 = vector.shape_cast %345 : vector<8x128xf32> to vector<1x8x128xf32>
    tpu.vector_store %arg3[%358, %c0_119, %c0_120], %361 {strides = array<i32>} : memref<8x8x128xf32, #tpu.memory_space<vmem>>, vector<1x8x128xf32>,
    %c8_i32_121 = arith.constant 8 : i32
    %362 = arith.muli %arg0, %c8_i32_121 : i32
    %363 = arith.addi %362, %c6_i32 : i32
    %c8_i32_122 = arith.constant 8 : i32
    %364 = arith.cmpi slt, %363, %c8_i32_122 : i32
    %365 = arith.extui %364 : i1 to i32
    %366 = arith.sitofp %365 : i32 to f32
    %367 = vector.broadcast %366 : f32 to vector<8x128xf32>
    %368 = arith.mulf %367, %345 : vector<8x128xf32>
    %cst_123 = arith.constant 1.000000e+00 : f32
    %369 = arith.subf %cst_123, %366 : f32
    %370 = vector.broadcast %369 : f32 to vector<8x128xf32>
    %371 = arith.mulf %370, %318 : vector<8x128xf32>
    %372 = arith.addf %368, %371 : vector<8x128xf32>
    %373 = vector.broadcast %366 : f32 to vector<8x128xf32>
    %374 = arith.mulf %373, %351 : vector<8x128xf32>
    %cst_124 = arith.constant 1.000000e+00 : f32
    %375 = arith.subf %cst_124, %366 : f32
    %376 = vector.broadcast %375 : f32 to vector<8x128xf32>
    %377 = arith.mulf %376, %324 : vector<8x128xf32>
    %378 = arith.addf %374, %377 : vector<8x128xf32>
    %379 = vector.broadcast %366 : f32 to vector<8x128xf32>
    %380 = arith.mulf %379, %357 : vector<8x128xf32>
    %cst_125 = arith.constant 1.000000e+00 : f32
    %381 = arith.subf %cst_125, %366 : f32
    %382 = vector.broadcast %381 : f32 to vector<8x128xf32>
    %383 = arith.mulf %382, %330 : vector<8x128xf32>
    %384 = arith.addf %380, %383 : vector<8x128xf32>
    %c7_i32 = arith.constant 7 : i32
    %cst_126 = arith.constant 0.000000e+00 : f32
    %385 = vector.broadcast %cst_126 : f32 to vector<8x128xf32>
    %386 = arith.subf %385, %378 : vector<8x128xf32>
    %387 = arith.addf %386, %384 : vector<8x128xf32>
    %cst_127 = arith.constant 1.000000e-01 : f32
    %388 = vector.broadcast %cst_127 : f32 to vector<8x128xf32>
    %389 = arith.mulf %388, %387 : vector<8x128xf32>
    %390 = arith.addf %378, %389 : vector<8x128xf32>
    %cst_128 = arith.constant 2.000000e-01 : f32
    %391 = vector.broadcast %cst_128 : f32 to vector<8x128xf32>
    %392 = arith.mulf %391, %384 : vector<8x128xf32>
    %393 = arith.subf %384, %392 : vector<8x128xf32>
    %cst_129 = arith.constant 1.000000e+00 : f32
    %394 = vector.broadcast %cst_129 : f32 to vector<8x128xf32>
    %395 = arith.subf %390, %394 : vector<8x128xf32>
    %cst_130 = arith.constant 0.000000e+00 : f32
    %396 = vector.broadcast %cst_130 : f32 to vector<8x128xf32>
    %397 = arith.cmpf ogt, %395, %396 : vector<8x128xf32>
    %398 = arith.extui %397 : vector<8x128xi1> to vector<8x128xi32>
    %399 = arith.sitofp %398 : vector<8x128xi32> to vector<8x128xf32>
    %cst_131 = arith.constant 1.000000e+00 : f32
    %400 = vector.broadcast %cst_131 : f32 to vector<8x128xf32>
    %401 = arith.subf %400, %399 : vector<8x128xf32>
    %402 = arith.mulf %401, %390 : vector<8x128xf32>
    %cst_132 = arith.constant 0.000000e+00 : f32
    %403 = vector.broadcast %cst_132 : f32 to vector<8x128xf32>
    %404 = arith.mulf %399, %403 : vector<8x128xf32>
    %405 = arith.addf %402, %404 : vector<8x128xf32>
    %406 = arith.index_cast %c7_i32 : i32 to index
    %c0_133 = arith.constant 0 : index
    %c0_134 = arith.constant 0 : index
    %407 = vector.load %arg1[%406, %c0_133, %c0_134] : memref<8x8x128xf32, #tpu.memory_space<vmem>>, vector<1x8x128xf32>
    %408 = vector.shape_cast %407 : vector<1x8x128xf32> to vector<8x128xf32>
    %409 = arith.addf %393, %408 : vector<8x128xf32>
    %cst_135 = arith.constant dense<0.000000e+00> : vector<8x128xf32>
    %410 = tpu.matmul %372, %3, %cst_135 {dimension_numbers = #tpu.dot_dimension_numbers<[1], [0], [0], [1], [0, 0, 1, 1], [], []>} : vector<8x128xf32>, vector<128x128xf32>, vector<8x128xf32> -> vector<8x128xf32>
    %411 = arith.addf %409, %410 : vector<8x128xf32>
    %412 = arith.index_cast %c7_i32 : i32 to index
    %c0_136 = arith.constant 0 : index
    %c0_137 = arith.constant 0 : index
    %413 = vector.load %arg3[%412, %c0_136, %c0_137] : memref<8x8x128xf32, #tpu.memory_space<vmem>>, vector<1x8x128xf32>
    %414 = vector.shape_cast %413 : vector<1x8x128xf32> to vector<8x128xf32>
    %415 = vector.shape_cast %399 : vector<8x128xf32> to vector<1x8x128xf32>
    tpu.vector_store %arg3[%412, %c0_136, %c0_137], %415 {strides = array<i32>} : memref<8x8x128xf32, #tpu.memory_space<vmem>>, vector<1x8x128xf32>,
    %c8_i32_138 = arith.constant 8 : i32
    %416 = arith.muli %arg0, %c8_i32_138 : i32
    %417 = arith.addi %416, %c7_i32 : i32
    %c8_i32_139 = arith.constant 8 : i32
    %418 = arith.cmpi slt, %417, %c8_i32_139 : i32
    %419 = arith.extui %418 : i1 to i32
    %420 = arith.sitofp %419 : i32 to f32
    %421 = vector.broadcast %420 : f32 to vector<8x128xf32>
    %422 = arith.mulf %421, %399 : vector<8x128xf32>
    %cst_140 = arith.constant 1.000000e+00 : f32
    %423 = arith.subf %cst_140, %420 : f32
    %424 = vector.broadcast %423 : f32 to vector<8x128xf32>
    %425 = arith.mulf %424, %372 : vector<8x128xf32>
    %426 = arith.addf %422, %425 : vector<8x128xf32>
    %427 = vector.broadcast %420 : f32 to vector<8x128xf32>
    %428 = arith.mulf %427, %405 : vector<8x128xf32>
    %cst_141 = arith.constant 1.000000e+00 : f32
    %429 = arith.subf %cst_141, %420 : f32
    %430 = vector.broadcast %429 : f32 to vector<8x128xf32>
    %431 = arith.mulf %430, %378 : vector<8x128xf32>
    %432 = arith.addf %428, %431 : vector<8x128xf32>
    %433 = vector.broadcast %420 : f32 to vector<8x128xf32>
    %434 = arith.mulf %433, %411 : vector<8x128xf32>
    %cst_142 = arith.constant 1.000000e+00 : f32
    %435 = arith.subf %cst_142, %420 : f32
    %436 = vector.broadcast %435 : f32 to vector<8x128xf32>
    %437 = arith.mulf %436, %384 : vector<8x128xf32>
    %438 = arith.addf %434, %437 : vector<8x128xf32>
    %c8_i32_143 = arith.constant 8 : i32
    %c0_144 = arith.constant 0 : index
    %c0_145 = arith.constant 0 : index
    %439 = vector.load %arg7[%c0_144, %c0_145] : memref<8x128xf32, #tpu.memory_space<vmem>>, vector<8x128xf32>
    tpu.vector_store %arg7[%c0_144, %c0_145], %426 {strides = array<i32>} : memref<8x128xf32, #tpu.memory_space<vmem>>, vector<8x128xf32>,
    %c0_146 = arith.constant 0 : index
    %c0_147 = arith.constant 0 : index
    %440 = vector.load %arg8[%c0_146, %c0_147] : memref<8x128xf32, #tpu.memory_space<vmem>>, vector<8x128xf32>
    tpu.vector_store %arg8[%c0_146, %c0_147], %432 {strides = array<i32>} : memref<8x128xf32, #tpu.memory_space<vmem>>, vector<8x128xf32>,
    %c0_148 = arith.constant 0 : index
    %c0_149 = arith.constant 0 : index
    %441 = vector.load %arg9[%c0_148, %c0_149] : memref<8x128xf32, #tpu.memory_space<vmem>>, vector<8x128xf32>
    tpu.vector_store %arg9[%c0_148, %c0_149], %438 {strides = array<i32>} : memref<8x128xf32, #tpu.memory_space<vmem>>, vector<8x128xf32>,
    %c0_i32_150 = arith.constant 0 : i32
    %442 = arith.cmpi eq, %arg0, %c0_i32_150 : i32
    %443 = arith.extui %442 : i1 to i32
    %c0_i32_151 = arith.constant 0 : i32
    %444 = arith.cmpi ne, %443, %c0_i32_151 : i32
    scf.if %444 {
      %c0_152 = arith.constant 0 : index
      %c0_153 = arith.constant 0 : index
      %445 = vector.load %arg7[%c0_152, %c0_153] : memref<8x128xf32, #tpu.memory_space<vmem>>, vector<8x128xf32>
      %c0_154 = arith.constant 0 : index
      %c0_155 = arith.constant 0 : index
      %446 = vector.load %arg4[%c0_154, %c0_155] : memref<8x128xf32, #tpu.memory_space<vmem>>, vector<8x128xf32>
      tpu.vector_store %arg4[%c0_154, %c0_155], %445 {strides = array<i32>} : memref<8x128xf32, #tpu.memory_space<vmem>>, vector<8x128xf32>,
      %c0_156 = arith.constant 0 : index
      %c0_157 = arith.constant 0 : index
      %447 = vector.load %arg8[%c0_156, %c0_157] : memref<8x128xf32, #tpu.memory_space<vmem>>, vector<8x128xf32>
      %c0_158 = arith.constant 0 : index
      %c0_159 = arith.constant 0 : index
      %448 = vector.load %arg5[%c0_158, %c0_159] : memref<8x128xf32, #tpu.memory_space<vmem>>, vector<8x128xf32>
      tpu.vector_store %arg5[%c0_158, %c0_159], %447 {strides = array<i32>} : memref<8x128xf32, #tpu.memory_space<vmem>>, vector<8x128xf32>,
      %c0_160 = arith.constant 0 : index
      %c0_161 = arith.constant 0 : index
      %449 = vector.load %arg9[%c0_160, %c0_161] : memref<8x128xf32, #tpu.memory_space<vmem>>, vector<8x128xf32>
      %c0_162 = arith.constant 0 : index
      %c0_163 = arith.constant 0 : index
      %450 = vector.load %arg6[%c0_162, %c0_163] : memref<8x128xf32, #tpu.memory_space<vmem>>, vector<8x128xf32>
      tpu.vector_store %arg6[%c0_162, %c0_163], %449 {strides = array<i32>} : memref<8x128xf32, #tpu.memory_space<vmem>>, vector<8x128xf32>,
    } else {
    }
    return
  }
  func.func @transform_0(%arg0: i32) -> (i32, i32, i32) {
    %c0_i32 = arith.constant 0 : i32
    %c0_i32_0 = arith.constant 0 : i32
    %c0_i32_1 = arith.constant 0 : i32
    return %arg0, %c0_i32, %c0_i32_0 : i32, i32, i32
  }
  func.func @transform_1(%arg0: i32) -> (i32, i32) {
    %c0_i32 = arith.constant 0 : i32
    %c0_i32_0 = arith.constant 0 : i32
    %c0_i32_1 = arith.constant 0 : i32
    return %c0_i32, %c0_i32_0 : i32, i32
  }
  func.func @transform_2(%arg0: i32) -> (i32, i32, i32) {
    %c0_i32 = arith.constant 0 : i32
    %c0_i32_0 = arith.constant 0 : i32
    %c0_i32_1 = arith.constant 0 : i32
    return %arg0, %c0_i32, %c0_i32_0 : i32, i32, i32
  }
  func.func @transform_3(%arg0: i32) -> (i32, i32) {
    %c0_i32 = arith.constant 0 : i32
    %c0_i32_0 = arith.constant 0 : i32
    %c0_i32_1 = arith.constant 0 : i32
    return %c0_i32, %c0_i32_0 : i32, i32
  }
  func.func @transform_4(%arg0: i32) -> (i32, i32) {
    %c0_i32 = arith.constant 0 : i32
    %c0_i32_0 = arith.constant 0 : i32
    %c0_i32_1 = arith.constant 0 : i32
    return %c0_i32, %c0_i32_0 : i32, i32
  }
  func.func @transform_5(%arg0: i32) -> (i32, i32) {
    %c0_i32 = arith.constant 0 : i32
    %c0_i32_0 = arith.constant 0 : i32
    %c0_i32_1 = arith.constant 0 : i32
    return %c0_i32, %c0_i32_0 : i32, i32
  }
}

</mosaic_0001>

<llo_original>
// kernel: snn_lif_forward.3
$region0: #{snn_lif_forward.3}
  #allocation0 [shape = 'u32[]', space=smem, size = 0x4, offset = 0x4, fixed_abs, tag = 'smem constant byte address 0x4 - core index']
  #allocation1 [shape = 'u32[144,128]{1,0:T(1,128)}', space=vmem, size = 0x12000, scoped, tag = 'internal scratch']
  #allocation2 [shape = 'f32[8,128]{1,0:T(8,128)}', space=vmem, size = 0x1000, scoped, tag = 'scratch operand']
  %s0 = inlined_call_operand.vmem [shape: f32[8,8,128], index: 0, kind: input, shape index: {}]
  %s1 = inlined_call_operand.vmem [shape: f32[8,8,128], index: 1, kind: output, shape index: {}]
  %s2 = sld [smem:[#allocation0]]
  $region18: #{snn_lif_forward.3} parent=0
    _
  %s4 = ssub.s32 1, %s2
  %s5 = scalar_select 0, %s4, %s2
  // Predicated region
  $region2: #{snn_lif_forward.3} parent=0 // pred_check
    _
  $region3: #{snn_lif_forward.3} parent=0 // pred_check_branch
    %7 = sbr.rel (0) target = $region5
  $region4: #{snn_lif_forward.3} parent=0 // pred_region
    _
  $region5: #{snn_lif_forward.3} parent=0 // pred_fallthru
    _
  %p8 = scmp.eq.s32.totalorder 0, 0
  // Predicated region
  $region6: #{snn_lif_forward.3} parent=0 // pred_check
    %p9 = pneg %p8
  $region7: #{snn_lif_forward.3} parent=0 // pred_check_branch
    %11 = sbr.rel (%p9) target = $region9
  $region8: #{snn_lif_forward.3} parent=0 // pred_region
    %12 = vst [vmem:[#allocation2] sm:$0xff] 0.0
  $region9: #{snn_lif_forward.3} parent=0 // pred_fallthru
    _
  %v13 = vld [vmem:[#allocation2] sm:$0xff]
  %v14 = vld [vmem:[%s0] sm:$0xff]
  %s15 = smul.u32 0, 8
  %p16 = scmp.eq.s32.totalorder %s15, 0
  %s17 = scalar_select %p16, 1, 0
  %s18 = scvt.s32.f32 %s17
  %v19 = vstv %s18
  %v20 = vmul.f32 %v19, %v14
  %s21 = ssub.f32 1.0, %s18
  %v22 = vsub.f32 %v14, %v13
  %v23 = vmul.f32 %v22, 0.22314355
  %v24 = vadd.f32 %v13, %v23
  %v25 = vstv %s21
  %v26 = vmul.f32 %v25, %v24
  %v27 = vadd.f32 %v20, %v26
  %28 = vst [vmem:[%s1] sm:$0xff] %v27
  %s29 = scalar_lea.vmem %s0, 8
  %v30 = vld [vmem:[%s29] sm:$0xff]
  %s31 = sadd.s32 %s15, 1
  %p32 = scmp.eq.s32.totalorder %s31, 0
  %s33 = scalar_select %p32, 1, 0
  %s34 = scvt.s32.f32 %s33
  %v35 = vstv %s34
  %v36 = vmul.f32 %v35, %v30
  %s37 = ssub.f32 1.0, %s34
  %v38 = vsub.f32 %v30, %v27
  %v39 = vmul.f32 %v38, 0.22314355
  %v40 = vadd.f32 %v27, %v39
  %v41 = vstv %s37
  %v42 = vmul.f32 %v41, %v40
  %v43 = vadd.f32 %v36, %v42
  %s44 = scalar_lea.vmem %s1, 8
  %45 = vst [vmem:[%s44] sm:$0xff] %v43
  %s46 = scalar_lea.vmem %s0, 16
  %v47 = vld [vmem:[%s46] sm:$0xff]
  %s48 = sadd.s32 %s15, 2
  %p49 = scmp.eq.s32.totalorder %s48, 0
  %s50 = scalar_select %p49, 1, 0
  %s51 = scvt.s32.f32 %s50
  %v52 = vstv %s51
  %v53 = vmul.f32 %v52, %v47
  %s54 = ssub.f32 1.0, %s51
  %v55 = vsub.f32 %v47, %v43
  %v56 = vmul.f32 %v55, 0.22314355
  %v57 = vadd.f32 %v43, %v56
  %v58 = vstv %s54
  %v59 = vmul.f32 %v58, %v57
  %v60 = vadd.f32 %v53, %v59
  %s61 = scalar_lea.vmem %s1, 16
  %62 = vst [vmem:[%s61] sm:$0xff] %v60
  %s63 = scalar_lea.vmem %s0, 24
  %v64 = vld [vmem:[%s63] sm:$0xff]
  %s65 = sadd.s32 %s15, 3
  %p66 = scmp.eq.s32.totalorder %s65, 0
  %s67 = scalar_select %p66, 1, 0
  %s68 = scvt.s32.f32 %s67
  %v69 = vstv %s68
  %v70 = vmul.f32 %v69, %v64
  %s71 = ssub.f32 1.0, %s68
  %v72 = vsub.f32 %v64, %v60
  %v73 = vmul.f32 %v72, 0.22314355
  %v74 = vadd.f32 %v60, %v73
  %v75 = vstv %s71
  %v76 = vmul.f32 %v75, %v74
  %v77 = vadd.f32 %v70, %v76
  %s78 = scalar_lea.vmem %s1, 24
  %79 = vst [vmem:[%s78] sm:$0xff] %v77
  %s80 = scalar_lea.vmem %s0, 32
  %v81 = vld [vmem:[%s80] sm:$0xff]
  %s82 = sadd.s32 %s15, 4
  %p83 = scmp.eq.s32.totalorder %s82, 0
  %s84 = scalar_select %p83, 1, 0
  %s85 = scvt.s32.f32 %s84
  %v86 = vstv %s85
  %v87 = vmul.f32 %v86, %v81
  %s88 = ssub.f32 1.0, %s85
  %v89 = vsub.f32 %v81, %v77
  %v90 = vmul.f32 %v89, 0.22314355
  %v91 = vadd.f32 %v77, %v90
  %v92 = vstv %s88
  %v93 = vmul.f32 %v92, %v91
  %v94 = vadd.f32 %v87, %v93
  %s95 = scalar_lea.vmem %s1, 32
  %96 = vst [vmem:[%s95] sm:$0xff] %v94
  %s97 = scalar_lea.vmem %s0, 40
  %v98 = vld [vmem:[%s97] sm:$0xff]
  %s99 = sadd.s32 %s15, 5
  %p100 = scmp.eq.s32.totalorder %s99, 0
  %s101 = scalar_select %p100, 1, 0
  %s102 = scvt.s32.f32 %s101
  %v103 = vstv %s102
  %v104 = vmul.f32 %v103, %v98
  %s105 = ssub.f32 1.0, %s102
  %v106 = vsub.f32 %v98, %v94
  %v107 = vmul.f32 %v106, 0.22314355
  %v108 = vadd.f32 %v94, %v107
  %v109 = vstv %s105
  %v110 = vmul.f32 %v109, %v108
  %v111 = vadd.f32 %v104, %v110
  %s112 = scalar_lea.vmem %s1, 40
  %113 = vst [vmem:[%s112] sm:$0xff] %v111
  %s114 = scalar_lea.vmem %s0, 48
  %v115 = vld [vmem:[%s114] sm:$0xff]
  %s116 = sadd.s32 %s15, 6
  %p117 = scmp.eq.s32.totalorder %s116, 0
  %s118 = scalar_select %p117, 1, 0
  %s119 = scvt.s32.f32 %s118
  %v120 = vstv %s119
  %v121 = vmul.f32 %v120, %v115
  %s122 = ssub.f32 1.0, %s119
  %v123 = vsub.f32 %v115, %v111
  %v124 = vmul.f32 %v123, 0.22314355
  %v125 = vadd.f32 %v111, %v124
  %v126 = vstv %s122
  %v127 = vmul.f32 %v126, %v125
  %v128 = vadd.f32 %v121, %v127
  %s129 = scalar_lea.vmem %s1, 48
  %130 = vst [vmem:[%s129] sm:$0xff] %v128
  %s131 = scalar_lea.vmem %s0, 56
  %v132 = vld [vmem:[%s131] sm:$0xff]
  %s133 = sadd.s32 %s15, 7
  %p134 = scmp.eq.s32.totalorder %s133, 0
  %s135 = scalar_select %p134, 1, 0
  %s136 = scvt.s32.f32 %s135
  %v137 = vstv %s136
  %v138 = vmul.f32 %v137, %v132
  %s139 = ssub.f32 1.0, %s136
  %v140 = vsub.f32 %v132, %v128
  %v141 = vmul.f32 %v140, 0.22314355
  %v142 = vadd.f32 %v128, %v141
  %v143 = vstv %s139
  %v144 = vmul.f32 %v143, %v142
  %v145 = vadd.f32 %v138, %v144
  %s146 = scalar_lea.vmem %s1, 56
  %147 = vst [vmem:[%s146] sm:$0xff] %v145
  %148 = vst [vmem:[#allocation2] sm:$0xff] %v145
  // Predicated region
  $region10: #{snn_lif_forward.3} parent=0 // pred_check
    _
  $region11: #{snn_lif_forward.3} parent=0 // pred_check_branch
    %150 = sbr.rel (0) target = $region13
  $region12: #{snn_lif_forward.3} parent=0 // pred_region
    _
  $region13: #{snn_lif_forward.3} parent=0 // pred_fallthru
    _
  // Predicated region
  $region14: #{snn_lif_forward.3} parent=0 // pred_check
    _
  $region15: #{snn_lif_forward.3} parent=0 // pred_check_branch
    %152 = sbr.rel (0) target = $region17
  $region16: #{snn_lif_forward.3} parent=0 // pred_region
    _
  $region17: #{snn_lif_forward.3} parent=0 // pred_fallthru
    _

// kernel: snn_lif_forward.2
$region0: #{snn_lif_forward.2}
  #allocation0 [shape = 'u32[]', space=smem, size = 0x4, offset = 0x4, fixed_abs, tag = 'smem constant byte address 0x4 - core index']
  #allocation1 [shape = 'u32[144,128]{1,0:T(1,128)}', space=vmem, size = 0x12000, scoped, tag = 'internal scratch']
  #allocation2 [shape = 'f32[8,128]{1,0:T(8,128)}', space=vmem, size = 0x1000, scoped, tag = 'scratch operand']
  #allocation3 [shape = 'f32[8,128]{1,0:T(8,128)}', space=vmem, size = 0x1000, scoped, tag = 'scratch operand']
  #allocation4 [shape = 'f32[8,128]{1,0:T(8,128)}', space=vmem, size = 0x1000, scoped, tag = 'scratch operand']
  %s0 = inlined_call_operand.vmem [shape: f32[8,8,128], index: 0, kind: input, shape index: {}]
  %s1 = inlined_call_operand.vmem [shape: f32[128,128], index: 1, kind: input, shape index: {}]
  %s2 = inlined_call_operand.vmem [shape: f32[8,8,128], index: 2, kind: output, shape index: {0}]
  %s3 = inlined_call_operand.vmem [shape: f32[8,128], index: 3, kind: output, shape index: {1}]
  %s4 = inlined_call_operand.vmem [shape: f32[8,128], index: 4, kind: output, shape index: {2}]
  %s5 = inlined_call_operand.vmem [shape: f32[8,128], index: 5, kind: output, shape index: {3}]
  %6 = xla_tuple %s2, %s3, %s4, %s5
  %s7 = sld [smem:[#allocation0]]
  $region50: #{snn_lif_forward.2} parent=0
    _
  %s9 = ssub.s32 1, %s7
  %s10 = scalar_select 0, %s9, %s7
  // Predicated region
  $region2: #{snn_lif_forward.2} parent=0 // pred_check
    _
  $region3: #{snn_lif_forward.2} parent=0 // pred_check_branch
    %12 = sbr.rel (0) target = $region5
  $region4: #{snn_lif_forward.2} parent=0 // pred_region
    _
  $region5: #{snn_lif_forward.2} parent=0 // pred_fallthru
    _
  // Predicated region
  $region6: #{snn_lif_forward.2} parent=0 // pred_check
    _
  $region7: #{snn_lif_forward.2} parent=0 // pred_check_branch
    %14 = sbr.rel (0) target = $region9
  $region8: #{snn_lif_forward.2} parent=0 // pred_region
    _
  $region9: #{snn_lif_forward.2} parent=0 // pred_fallthru
    _
  %p15 = scmp.eq.s32.totalorder 0, 0
  // Predicated region
  $region10: #{snn_lif_forward.2} parent=0 // pred_check
    %p16 = pneg %p15
  $region11: #{snn_lif_forward.2} parent=0 // pred_check_branch
    %18 = sbr.rel (%p16) target = $region13
  $region12: #{snn_lif_forward.2} parent=0 // pred_region
    %19 = vst [vmem:[#allocation2] sm:$0xff] 0.0
    %20 = vst [vmem:[#allocation3] sm:$0xff] 0.0
    %21 = vst [vmem:[#allocation4] sm:$0xff] 0.0
  $region13: #{snn_lif_forward.2} parent=0 // pred_fallthru
    _
  %v22 = vld [vmem:[%s1] sm:$0xff]
  %v23 = vld [vmem:[%s1 + $0x8] sm:$0xff]
  %v24 = vld [vmem:[%s1 + $0x10] sm:$0xff]
  %v25 = vld [vmem:[%s1 + $0x18] sm:$0xff]
  %v26 = vld [vmem:[%s1 + $0x20] sm:$0xff]
  %v27 = vld [vmem:[%s1 + $0x28] sm:$0xff]
  %v28 = vld [vmem:[%s1 + $0x30] sm:$0xff]
  %v29 = vld [vmem:[%s1 + $0x38] sm:$0xff]
  %v30 = vld [vmem:[%s1 + $0x40] sm:$0xff]
  %v31 = vld [vmem:[%s1 + $0x48] sm:$0xff]
  %v32 = vld [vmem:[%s1 + $0x50] sm:$0xff]
  %v33 = vld [vmem:[%s1 + $0x58] sm:$0xff]
  %v34 = vld [vmem:[%s1 + $0x60] sm:$0xff]
  %v35 = vld [vmem:[%s1 + $0x68] sm:$0xff]
  %v36 = vld [vmem:[%s1 + $0x70] sm:$0xff]
  %v37 = vld [vmem:[%s1 + $0x78] sm:$0xff]
  %v38 = vld [vmem:[#allocation2] sm:$0xff]
  %v39 = vld [vmem:[#allocation3] sm:$0xff]
  %v40 = vld [vmem:[#allocation4] sm:$0xff]
  %v41 = vsub.f32 0.0, %v39
  %v42 = vadd.f32 %v41, %v40
  %v43 = vmul.f32 %v42, 0.1
  %v44 = vadd.f32 %v39, %v43
  %v45 = vmul.f32 %v40, 0.2
  %v46 = vsub.f32 %v40, %v45
  %v47 = vsub.f32 %v44, 1.0
  %vm48 = vcmp.gt.f32.partialorder %v47, 0.0
  %v49 = vsel %vm48, 1, 0
  %v50 = vcvt.s32.f32 %v49
  %v51 = vsub.f32 1.0, %v50
  %v52 = vmul.f32 %v51, %v44
  %v53 = vmul.f32 %v50, 0.0
  %v54 = vadd.f32 %v52, %v53
  %v55 = vld [vmem:[%s0] sm:$0xff]
  %v56 = vadd.f32 %v46, %v55
  %57 = vmatprep.subr.mxu0 0.0
  %58 = vmatpush1.msra.mxu0 %v22
  %59 = vmatprep.subr.mxu0 0.0
  %60 = vmatpush1.msra.mxu0 %v23
  %61 = vmatprep.subr.mxu0 0.0
  %62 = vmatpush1.msra.mxu0 %v24
  %63 = vmatprep.subr.mxu0 0.0
  %64 = vmatpush1.msra.mxu0 %v25
  %65 = vmatprep.subr.mxu0 0.0
  %66 = vmatpush1.msra.mxu0 %v26
  %67 = vmatprep.subr.mxu0 0.0
  %68 = vmatpush1.msra.mxu0 %v27
  %69 = vmatprep.subr.mxu0 0.0
  %70 = vmatpush1.msra.mxu0 %v28
  %71 = vmatprep.subr.mxu0 0.0
  %72 = vmatpush1.msra.mxu0 %v29
  %73 = vmatprep.subr.mxu0 0.0
  %74 = vmatpush1.msra.mxu0 %v30
  %75 = vmatprep.subr.mxu0 0.0
  %76 = vmatpush1.msra.mxu0 %v31
  %77 = vmatprep.subr.mxu0 0.0
  %78 = vmatpush1.msra.mxu0 %v32
  %79 = vmatprep.subr.mxu0 0.0
  %80 = vmatpush1.msra.mxu0 %v33
  %81 = vmatprep.subr.mxu0 0.0
  %82 = vmatpush1.msra.mxu0 %v34
  %83 = vmatprep.subr.mxu0 0.0
  %84 = vmatpush1.msra.mxu0 %v35
  %85 = vmatprep.subr.mxu0 0.0
  %86 = vmatpush1.msra.mxu0 %v36
  %87 = vmatprep.subr.mxu0 0.0
  %88 = vmatpush1.msra.mxu0 %v37
  %89 = vmatprep.subr.mxu0 0.0
  %90 = vmatpush1.msra.mxu0 0.0
  %91 = vmatprep.subr.mxu0 0.0
  %92 = vmatpush1.msra.mxu0 0.0
  %93 = vmatprep.subr.mxu0 0.0
  %94 = vmatpush1.msra.mxu0 0.0
  %95 = vmatprep.subr.mxu0 0.0
  %96 = vmatpush1.msra.mxu0 0.0
  %97 = vmatprep.subr.mxu0 0.0
  %98 = vmatpush1.msra.mxu0 0.0
  %99 = vmatprep.subr.mxu0 0.0
  %100 = vmatpush1.msra.mxu0 0.0
  %101 = vmatprep.subr.mxu0 0.0
  %102 = vmatpush1.msra.mxu0 0.0
  %103 = vmatprep.subr.mxu0 0.0
  %104 = vmatpush1.msra.mxu0 0.0
  %105 = vmatprep.subr.mxu0 0.0
  %106 = vmatpush1.msra.mxu0 0.0
  %107 = vmatprep.subr.mxu0 0.0
  %108 = vmatpush1.msra.mxu0 0.0
  %109 = vmatprep.subr.mxu0 0.0
  %110 = vmatpush1.msra.mxu0 0.0
  %111 = vmatprep.subr.mxu0 0.0
  %112 = vmatpush1.msra.mxu0 0.0
  %113 = vmatprep.subr.mxu0 0.0
  %114 = vmatpush1.msra.mxu0 0.0
  %115 = vmatprep.subr.mxu0 0.0
  %116 = vmatpush1.msra.mxu0 0.0
  %117 = vmatprep.subr.mxu0 0.0
  %118 = vmatpush1.msra.mxu0 0.0
  %119 = vmatprep.subr.mxu0 0.0
  %120 = vmatpush1.msra.mxu0 0.0
  %121 = vmatprep.mubr.f32.mxu0 0.0
  %122 = vmatmul.mubr.f32.gmra.mrb[0].mxu0 %v38
  %v123 = vpop.f32.mrb[0].mxu0
  %v124 = vadd.f32 0.0, %v123
  %v125 = vpop.f32.mrb[0].mxu0
  %126 = vdwg.mxu0
  %v127 = vadd.f32 %v56, %v124
  %128 = vst [vmem:[%s2] sm:$0xff] %v50
  %s129 = smul.u32 0, 8
  %p130 = scmp.lt.s32.totalorder %s129, 8
  %s131 = scalar_select %p130, 1, 0
  %s132 = scvt.s32.f32 %s131
  %v133 = vstv %s132
  %v134 = vmul.f32 %v133, %v50
  %s135 = ssub.f32 1.0, %s132
  %v136 = vstv %s135
  %v137 = vmul.f32 %v136, %v38
  %v138 = vadd.f32 %v134, %v137
  %v139 = vmul.f32 %v133, %v54
  %v140 = vmul.f32 %v136, %v39
  %v141 = vadd.f32 %v139, %v140
  %v142 = vmul.f32 %v133, %v127
  %v143 = vmul.f32 %v136, %v40
  %v144 = vadd.f32 %v142, %v143
  %v145 = vsub.f32 0.0, %v141
  %v146 = vadd.f32 %v145, %v144
  %v147 = vmul.f32 %v146, 0.1
  %v148 = vadd.f32 %v141, %v147
  %v149 = vmul.f32 %v144, 0.2
  %v150 = vsub.f32 %v144, %v149
  %v151 = vsub.f32 %v148, 1.0
  %vm152 = vcmp.gt.f32.partialorder %v151, 0.0
  %v153 = vsel %vm152, 1, 0
  %v154 = vcvt.s32.f32 %v153
  %v155 = vsub.f32 1.0, %v154
  %v156 = vmul.f32 %v155, %v148
  %v157 = vmul.f32 %v154, 0.0
  %v158 = vadd.f32 %v156, %v157
  %s159 = scalar_lea.vmem %s0, 8
  %v160 = vld [vmem:[%s159] sm:$0xff]
  %v161 = vadd.f32 %v150, %v160
  %162 = vmatprep.subr.mxu0 0.0
  %163 = vmatpush1.msra.mxu0 %v22
  %164 = vmatprep.subr.mxu0 0.0
  %165 = vmatpush1.msra.mxu0 %v23
  %166 = vmatprep.subr.mxu0 0.0
  %167 = vmatpush1.msra.mxu0 %v24
  %168 = vmatprep.subr.mxu0 0.0
  %169 = vmatpush1.msra.mxu0 %v25
  %170 = vmatprep.subr.mxu0 0.0
  %171 = vmatpush1.msra.mxu0 %v26
  %172 = vmatprep.subr.mxu0 0.0
  %173 = vmatpush1.msra.mxu0 %v27
  %174 = vmatprep.subr.mxu0 0.0
  %175 = vmatpush1.msra.mxu0 %v28
  %176 = vmatprep.subr.mxu0 0.0
  %177 = vmatpush1.msra.mxu0 %v29
  %178 = vmatprep.subr.mxu0 0.0
  %179 = vmatpush1.msra.mxu0 %v30
  %180 = vmatprep.subr.mxu0 0.0
  %181 = vmatpush1.msra.mxu0 %v31
  %182 = vmatprep.subr.mxu0 0.0
  %183 = vmatpush1.msra.mxu0 %v32
  %184 = vmatprep.subr.mxu0 0.0
  %185 = vmatpush1.msra.mxu0 %v33
  %186 = vmatprep.subr.mxu0 0.0
  %187 = vmatpush1.msra.mxu0 %v34
  %188 = vmatprep.subr.mxu0 0.0
  %189 = vmatpush1.msra.mxu0 %v35
  %190 = vmatprep.subr.mxu0 0.0
  %191 = vmatpush1.msra.mxu0 %v36
  %192 = vmatprep.subr.mxu0 0.0
  %193 = vmatpush1.msra.mxu0 %v37
  %194 = vmatprep.subr.mxu0 0.0
  %195 = vmatpush1.msra.mxu0 0.0
  %196 = vmatprep.subr.mxu0 0.0
  %197 = vmatpush1.msra.mxu0 0.0
  %198 = vmatprep.subr.mxu0 0.0
  %199 = vmatpush1.msra.mxu0 0.0
  %200 = vmatprep.subr.mxu0 0.0
  %201 = vmatpush1.msra.mxu0 0.0
  %202 = vmatprep.subr.mxu0 0.0
  %203 = vmatpush1.msra.mxu0 0.0
  %204 = vmatprep.subr.mxu0 0.0
  %205 = vmatpush1.msra.mxu0 0.0
  %206 = vmatprep.subr.mxu0 0.0
  %207 = vmatpush1.msra.mxu0 0.0
  %208 = vmatprep.subr.mxu0 0.0
  %209 = vmatpush1.msra.mxu0 0.0
  %210 = vmatprep.subr.mxu0 0.0
  %211 = vmatpush1.msra.mxu0 0.0
  %212 = vmatprep.subr.mxu0 0.0
  %213 = vmatpush1.msra.mxu0 0.0
  %214 = vmatprep.subr.mxu0 0.0
  %215 = vmatpush1.msra.mxu0 0.0
  %216 = vmatprep.subr.mxu0 0.0
  %217 = vmatpush1.msra.mxu0 0.0
  %218 = vmatprep.subr.mxu0 0.0
  %219 = vmatpush1.msra.mxu0 0.0
  %220 = vmatprep.subr.mxu0 0.0
  %221 = vmatpush1.msra.mxu0 0.0
  %222 = vmatprep.subr.mxu0 0.0
  %223 = vmatpush1.msra.mxu0 0.0
  %224 = vmatprep.subr.mxu0 0.0
  %225 = vmatpush1.msra.mxu0 0.0
  %226 = vmatprep.mubr.f32.mxu0 0.0
  %227 = vmatmul.mubr.f32.gmra.mrb[0].mxu0 %v138
  %v228 = vpop.f32.mrb[0].mxu0
  %v229 = vadd.f32 0.0, %v228
  %v230 = vpop.f32.mrb[0].mxu0
  %231 = vdwg.mxu0
  %v232 = vadd.f32 %v161, %v229
  %s233 = scalar_lea.vmem %s2, 8
  %234 = vst [vmem:[%s233] sm:$0xff] %v154
  %s235 = sadd.s32 %s129, 1
  %p236 = scmp.lt.s32.totalorder %s235, 8
  %s237 = scalar_select %p236, 1, 0
  %s238 = scvt.s32.f32 %s237
  %v239 = vstv %s238
  %v240 = vmul.f32 %v239, %v154
  %s241 = ssub.f32 1.0, %s238
  %v242 = vstv %s241
  %v243 = vmul.f32 %v242, %v138
  %v244 = vadd.f32 %v240, %v243
  %v245 = vmul.f32 %v239, %v158
  %v246 = vmul.f32 %v242, %v141
  %v247 = vadd.f32 %v245, %v246
  %v248 = vmul.f32 %v239, %v232
  %v249 = vmul.f32 %v242, %v144
  %v250 = vadd.f32 %v248, %v249
  %v251 = vsub.f32 0.0, %v247
  %v252 = vadd.f32 %v251, %v250
  %v253 = vmul.f32 %v252, 0.1
  %v254 = vadd.f32 %v247, %v253
  %v255 = vmul.f32 %v250, 0.2
  %v256 = vsub.f32 %v250, %v255
  %v257 = vsub.f32 %v254, 1.0
  %vm258 = vcmp.gt.f32.partialorder %v257, 0.0
  %v259 = vsel %vm258, 1, 0
  %v260 = vcvt.s32.f32 %v259
  %v261 = vsub.f32 1.0, %v260
  %v262 = vmul.f32 %v261, %v254
  %v263 = vmul.f32 %v260, 0.0
  %v264 = vadd.f32 %v262, %v263
  %s265 = scalar_lea.vmem %s0, 16
  %v266 = vld [vmem:[%s265] sm:$0xff]
  %v267 = vadd.f32 %v256, %v266
  %268 = vmatprep.subr.mxu0 0.0
  %269 = vmatpush1.msra.mxu0 %v22
  %270 = vmatprep.subr.mxu0 0.0
  %271 = vmatpush1.msra.mxu0 %v23
  %272 = vmatprep.subr.mxu0 0.0
  %273 = vmatpush1.msra.mxu0 %v24
  %274 = vmatprep.subr.mxu0 0.0
  %275 = vmatpush1.msra.mxu0 %v25
  %276 = vmatprep.subr.mxu0 0.0
  %277 = vmatpush1.msra.mxu0 %v26
  %278 = vmatprep.subr.mxu0 0.0
  %279 = vmatpush1.msra.mxu0 %v27
  %280 = vmatprep.subr.mxu0 0.0
  %281 = vmatpush1.msra.mxu0 %v28
  %282 = vmatprep.subr.mxu0 0.0
  %283 = vmatpush1.msra.mxu0 %v29
  %284 = vmatprep.subr.mxu0 0.0
  %285 = vmatpush1.msra.mxu0 %v30
  %286 = vmatprep.subr.mxu0 0.0
  %287 = vmatpush1.msra.mxu0 %v31
  %288 = vmatprep.subr.mxu0 0.0
  %289 = vmatpush1.msra.mxu0 %v32
  %290 = vmatprep.subr.mxu0 0.0
  %291 = vmatpush1.msra.mxu0 %v33
  %292 = vmatprep.subr.mxu0 0.0
  %293 = vmatpush1.msra.mxu0 %v34
  %294 = vmatprep.subr.mxu0 0.0
  %295 = vmatpush1.msra.mxu0 %v35
  %296 = vmatprep.subr.mxu0 0.0
  %297 = vmatpush1.msra.mxu0 %v36
  %298 = vmatprep.subr.mxu0 0.0
  %299 = vmatpush1.msra.mxu0 %v37
  %300 = vmatprep.subr.mxu0 0.0
  %301 = vmatpush1.msra.mxu0 0.0
  %302 = vmatprep.subr.mxu0 0.0
  %303 = vmatpush1.msra.mxu0 0.0
  %304 = vmatprep.subr.mxu0 0.0
  %305 = vmatpush1.msra.mxu0 0.0
  %306 = vmatprep.subr.mxu0 0.0
  %307 = vmatpush1.msra.mxu0 0.0
  %308 = vmatprep.subr.mxu0 0.0
  %309 = vmatpush1.msra.mxu0 0.0
  %310 = vmatprep.subr.mxu0 0.0
  %311 = vmatpush1.msra.mxu0 0.0
  %312 = vmatprep.subr.mxu0 0.0
  %313 = vmatpush1.msra.mxu0 0.0
  %314 = vmatprep.subr.mxu0 0.0
  %315 = vmatpush1.msra.mxu0 0.0
  %316 = vmatprep.subr.mxu0 0.0
  %317 = vmatpush1.msra.mxu0 0.0
  %318 = vmatprep.subr.mxu0 0.0
  %319 = vmatpush1.msra.mxu0 0.0
  %320 = vmatprep.subr.mxu0 0.0
  %321 = vmatpush1.msra.mxu0 0.0
  %322 = vmatprep.subr.mxu0 0.0
  %323 = vmatpush1.msra.mxu0 0.0
  %324 = vmatprep.subr.mxu0 0.0
  %325 = vmatpush1.msra.mxu0 0.0
  %326 = vmatprep.subr.mxu0 0.0
  %327 = vmatpush1.msra.mxu0 0.0
  %328 = vmatprep.subr.mxu0 0.0
  %329 = vmatpush1.msra.mxu0 0.0
  %330 = vmatprep.subr.mxu0 0.0
  %331 = vmatpush1.msra.mxu0 0.0
  %332 = vmatprep.mubr.f32.mxu0 0.0
  %333 = vmatmul.mubr.f32.gmra.mrb[0].mxu0 %v244
  %v334 = vpop.f32.mrb[0].mxu0
  %v335 = vadd.f32 0.0, %v334
  %v336 = vpop.f32.mrb[0].mxu0
  %337 = vdwg.mxu0
  %v338 = vadd.f32 %v267, %v335
  %s339 = scalar_lea.vmem %s2, 16
  %340 = vst [vmem:[%s339] sm:$0xff] %v260
  %s341 = sadd.s32 %s129, 2
  %p342 = scmp.lt.s32.totalorder %s341, 8
  %s343 = scalar_select %p342, 1, 0
  %s344 = scvt.s32.f32 %s343
  %v345 = vstv %s344
  %v346 = vmul.f32 %v345, %v260
  %s347 = ssub.f32 1.0, %s344
  %v348 = vstv %s347
  %v349 = vmul.f32 %v348, %v244
  %v350 = vadd.f32 %v346, %v349
  %v351 = vmul.f32 %v345, %v264
  %v352 = vmul.f32 %v348, %v247
  %v353 = vadd.f32 %v351, %v352
  %v354 = vmul.f32 %v345, %v338
  %v355 = vmul.f32 %v348, %v250
  %v356 = vadd.f32 %v354, %v355
  %v357 = vsub.f32 0.0, %v353
  %v358 = vadd.f32 %v357, %v356
  %v359 = vmul.f32 %v358, 0.1
  %v360 = vadd.f32 %v353, %v359
  %v361 = vmul.f32 %v356, 0.2
  %v362 = vsub.f32 %v356, %v361
  %v363 = vsub.f32 %v360, 1.0
  %vm364 = vcmp.gt.f32.partialorder %v363, 0.0
  %v365 = vsel %vm364, 1, 0
  %v366 = vcvt.s32.f32 %v365
  %v367 = vsub.f32 1.0, %v366
  %v368 = vmul.f32 %v367, %v360
  %v369 = vmul.f32 %v366, 0.0
  %v370 = vadd.f32 %v368, %v369
  %s371 = scalar_lea.vmem %s0, 24
  %v372 = vld [vmem:[%s371] sm:$0xff]
  %v373 = vadd.f32 %v362, %v372
  %374 = vmatprep.subr.mxu0 0.0
  %375 = vmatpush1.msra.mxu0 %v22
  %376 = vmatprep.subr.mxu0 0.0
  %377 = vmatpush1.msra.mxu0 %v23
  %378 = vmatprep.subr.mxu0 0.0
  %379 = vmatpush1.msra.mxu0 %v24
  %380 = vmatprep.subr.mxu0 0.0
  %381 = vmatpush1.msra.mxu0 %v25
  %382 = vmatprep.subr.mxu0 0.0
  %383 = vmatpush1.msra.mxu0 %v26
  %384 = vmatprep.subr.mxu0 0.0
  %385 = vmatpush1.msra.mxu0 %v27
  %386 = vmatprep.subr.mxu0 0.0
  %387 = vmatpush1.msra.mxu0 %v28
  %388 = vmatprep.subr.mxu0 0.0
  %389 = vmatpush1.msra.mxu0 %v29
  %390 = vmatprep.subr.mxu0 0.0
  %391 = vmatpush1.msra.mxu0 %v30
  %392 = vmatprep.subr.mxu0 0.0
  %393 = vmatpush1.msra.mxu0 %v31
  %394 = vmatprep.subr.mxu0 0.0
  %395 = vmatpush1.msra.mxu0 %v32
  %396 = vmatprep.subr.mxu0 0.0
  %397 = vmatpush1.msra.mxu0 %v33
  %398 = vmatprep.subr.mxu0 0.0
  %399 = vmatpush1.msra.mxu0 %v34
  %400 = vmatprep.subr.mxu0 0.0
  %401 = vmatpush1.msra.mxu0 %v35
  %402 = vmatprep.subr.mxu0 0.0
  %403 = vmatpush1.msra.mxu0 %v36
  %404 = vmatprep.subr.mxu0 0.0
  %405 = vmatpush1.msra.mxu0 %v37
  %406 = vmatprep.subr.mxu0 0.0
  %407 = vmatpush1.msra.mxu0 0.0
  %408 = vmatprep.subr.mxu0 0.0
  %409 = vmatpush1.msra.mxu0 0.0
  %410 = vmatprep.subr.mxu0 0.0
  %411 = vmatpush1.msra.mxu0 0.0
  %412 = vmatprep.subr.mxu0 0.0
  %413 = vmatpush1.msra.mxu0 0.0
  %414 = vmatprep.subr.mxu0 0.0
  %415 = vmatpush1.msra.mxu0 0.0
  %416 = vmatprep.subr.mxu0 0.0
  %417 = vmatpush1.msra.mxu0 0.0
  %418 = vmatprep.subr.mxu0 0.0
  %419 = vmatpush1.msra.mxu0 0.0
  %420 = vmatprep.subr.mxu0 0.0
  %421 = vmatpush1.msra.mxu0 0.0
  %422 = vmatprep.subr.mxu0 0.0
  %423 = vmatpush1.msra.mxu0 0.0
  %424 = vmatprep.subr.mxu0 0.0
  %425 = vmatpush1.msra.mxu0 0.0
  %426 = vmatprep.subr.mxu0 0.0
  %427 = vmatpush1.msra.mxu0 0.0
  %428 = vmatprep.subr.mxu0 0.0
  %429 = vmatpush1.msra.mxu0 0.0
  %430 = vmatprep.subr.mxu0 0.0
  %431 = vmatpush1.msra.mxu0 0.0
  %432 = vmatprep.subr.mxu0 0.0
  %433 = vmatpush1.msra.mxu0 0.0
  %434 = vmatprep.subr.mxu0 0.0
  %435 = vmatpush1.msra.mxu0 0.0
  %436 = vmatprep.subr.mxu0 0.0
  %437 = vmatpush1.msra.mxu0 0.0
  %438 = vmatprep.mubr.f32.mxu0 0.0
  %439 = vmatmul.mubr.f32.gmra.mrb[0].mxu0 %v350
  %v440 = vpop.f32.mrb[0].mxu0
  %v441 = vadd.f32 0.0, %v440
  %v442 = vpop.f32.mrb[0].mxu0
  %443 = vdwg.mxu0
  %v444 = vadd.f32 %v373, %v441
  %s445 = scalar_lea.vmem %s2, 24
  %446 = vst [vmem:[%s445] sm:$0xff] %v366
  %s447 = sadd.s32 %s129, 3
  %p448 = scmp.lt.s32.totalorder %s447, 8
  %s449 = scalar_select %p448, 1, 0
  %s450 = scvt.s32.f32 %s449
  %v451 = vstv %s450
  %v452 = vmul.f32 %v451, %v366
  %s453 = ssub.f32 1.0, %s450
  %v454 = vstv %s453
  %v455 = vmul.f32 %v454, %v350
  %v456 = vadd.f32 %v452, %v455
  %v457 = vmul.f32 %v451, %v370
  %v458 = vmul.f32 %v454, %v353
  %v459 = vadd.f32 %v457, %v458
  %v460 = vmul.f32 %v451, %v444
  %v461 = vmul.f32 %v454, %v356
  %v462 = vadd.f32 %v460, %v461
  %v463 = vsub.f32 0.0, %v459
  %v464 = vadd.f32 %v463, %v462
  %v465 = vmul.f32 %v464, 0.1
  %v466 = vadd.f32 %v459, %v465
  %v467 = vmul.f32 %v462, 0.2
  %v468 = vsub.f32 %v462, %v467
  %v469 = vsub.f32 %v466, 1.0
  %vm470 = vcmp.gt.f32.partialorder %v469, 0.0
  %v471 = vsel %vm470, 1, 0
  %v472 = vcvt.s32.f32 %v471
  %v473 = vsub.f32 1.0, %v472
  %v474 = vmul.f32 %v473, %v466
  %v475 = vmul.f32 %v472, 0.0
  %v476 = vadd.f32 %v474, %v475
  %s477 = scalar_lea.vmem %s0, 32
  %v478 = vld [vmem:[%s477] sm:$0xff]
  %v479 = vadd.f32 %v468, %v478
  %480 = vmatprep.subr.mxu0 0.0
  %481 = vmatpush1.msra.mxu0 %v22
  %482 = vmatprep.subr.mxu0 0.0
  %483 = vmatpush1.msra.mxu0 %v23
  %484 = vmatprep.subr.mxu0 0.0
  %485 = vmatpush1.msra.mxu0 %v24
  %486 = vmatprep.subr.mxu0 0.0
  %487 = vmatpush1.msra.mxu0 %v25
  %488 = vmatprep.subr.mxu0 0.0
  %489 = vmatpush1.msra.mxu0 %v26
  %490 = vmatprep.subr.mxu0 0.0
  %491 = vmatpush1.msra.mxu0 %v27
  %492 = vmatprep.subr.mxu0 0.0
  %493 = vmatpush1.msra.mxu0 %v28
  %494 = vmatprep.subr.mxu0 0.0
  %495 = vmatpush1.msra.mxu0 %v29
  %496 = vmatprep.subr.mxu0 0.0
  %497 = vmatpush1.msra.mxu0 %v30
  %498 = vmatprep.subr.mxu0 0.0
  %499 = vmatpush1.msra.mxu0 %v31
  %500 = vmatprep.subr.mxu0 0.0
  %501 = vmatpush1.msra.mxu0 %v32
  %502 = vmatprep.subr.mxu0 0.0
  %503 = vmatpush1.msra.mxu0 %v33
  %504 = vmatprep.subr.mxu0 0.0
  %505 = vmatpush1.msra.mxu0 %v34
  %506 = vmatprep.subr.mxu0 0.0
  %507 = vmatpush1.msra.mxu0 %v35
  %508 = vmatprep.subr.mxu0 0.0
  %509 = vmatpush1.msra.mxu0 %v36
  %510 = vmatprep.subr.mxu0 0.0
  %511 = vmatpush1.msra.mxu0 %v37
  %512 = vmatprep.subr.mxu0 0.0
  %513 = vmatpush1.msra.mxu0 0.0
  %514 = vmatprep.subr.mxu0 0.0
  %515 = vmatpush1.msra.mxu0 0.0
  %516 = vmatprep.subr.mxu0 0.0
  %517 = vmatpush1.msra.mxu0 0.0
  %518 = vmatprep.subr.mxu0 0.0
  %519 = vmatpush1.msra.mxu0 0.0
  %520 = vmatprep.subr.mxu0 0.0
  %521 = vmatpush1.msra.mxu0 0.0
  %522 = vmatprep.subr.mxu0 0.0
  %523 = vmatpush1.msra.mxu0 0.0
  %524 = vmatprep.subr.mxu0 0.0
  %525 = vmatpush1.msra.mxu0 0.0
  %526 = vmatprep.subr.mxu0 0.0
  %527 = vmatpush1.msra.mxu0 0.0
  %528 = vmatprep.subr.mxu0 0.0
  %529 = vmatpush1.msra.mxu0 0.0
  %530 = vmatprep.subr.mxu0 0.0
  %531 = vmatpush1.msra.mxu0 0.0
  %532 = vmatprep.subr.mxu0 0.0
  %533 = vmatpush1.msra.mxu0 0.0
  %534 = vmatprep.subr.mxu0 0.0
  %535 = vmatpush1.msra.mxu0 0.0
  %536 = vmatprep.subr.mxu0 0.0
  %537 = vmatpush1.msra.mxu0 0.0
  %538 = vmatprep.subr.mxu0 0.0
  %539 = vmatpush1.msra.mxu0 0.0
  %540 = vmatprep.subr.mxu0 0.0
  %541 = vmatpush1.msra.mxu0 0.0
  %542 = vmatprep.subr.mxu0 0.0
  %543 = vmatpush1.msra.mxu0 0.0
  %544 = vmatprep.mubr.f32.mxu0 0.0
  %545 = vmatmul.mubr.f32.gmra.mrb[0].mxu0 %v456
  %v546 = vpop.f32.mrb[0].mxu0
  %v547 = vadd.f32 0.0, %v546
  %v548 = vpop.f32.mrb[0].mxu0
  %549 = vdwg.mxu0
  %v550 = vadd.f32 %v479, %v547
  %s551 = scalar_lea.vmem %s2, 32
  %552 = vst [vmem:[%s551] sm:$0xff] %v472
  %s553 = sadd.s32 %s129, 4
  %p554 = scmp.lt.s32.totalorder %s553, 8
  %s555 = scalar_select %p554, 1, 0
  %s556 = scvt.s32.f32 %s555
  %v557 = vstv %s556
  %v558 = vmul.f32 %v557, %v472
  %s559 = ssub.f32 1.0, %s556
  %v560 = vstv %s559
  %v561 = vmul.f32 %v560, %v456
  %v562 = vadd.f32 %v558, %v561
  %v563 = vmul.f32 %v557, %v476
  %v564 = vmul.f32 %v560, %v459
  %v565 = vadd.f32 %v563, %v564
  %v566 = vmul.f32 %v557, %v550
  %v567 = vmul.f32 %v560, %v462
  %v568 = vadd.f32 %v566, %v567
  %v569 = vsub.f32 0.0, %v565
  %v570 = vadd.f32 %v569, %v568
  %v571 = vmul.f32 %v570, 0.1
  %v572 = vadd.f32 %v565, %v571
  %v573 = vmul.f32 %v568, 0.2
  %v574 = vsub.f32 %v568, %v573
  %v575 = vsub.f32 %v572, 1.0
  %vm576 = vcmp.gt.f32.partialorder %v575, 0.0
  %v577 = vsel %vm576, 1, 0
  %v578 = vcvt.s32.f32 %v577
  %v579 = vsub.f32 1.0, %v578
  %v580 = vmul.f32 %v579, %v572
  %v581 = vmul.f32 %v578, 0.0
  %v582 = vadd.f32 %v580, %v581
  %s583 = scalar_lea.vmem %s0, 40
  %v584 = vld [vmem:[%s583] sm:$0xff]
  %v585 = vadd.f32 %v574, %v584
  %586 = vmatprep.subr.mxu0 0.0
  %587 = vmatpush1.msra.mxu0 %v22
  %588 = vmatprep.subr.mxu0 0.0
  %589 = vmatpush1.msra.mxu0 %v23
  %590 = vmatprep.subr.mxu0 0.0
  %591 = vmatpush1.msra.mxu0 %v24
  %592 = vmatprep.subr.mxu0 0.0
  %593 = vmatpush1.msra.mxu0 %v25
  %594 = vmatprep.subr.mxu0 0.0
  %595 = vmatpush1.msra.mxu0 %v26
  %596 = vmatprep.subr.mxu0 0.0
  %597 = vmatpush1.msra.mxu0 %v27
  %598 = vmatprep.subr.mxu0 0.0
  %599 = vmatpush1.msra.mxu0 %v28
  %600 = vmatprep.subr.mxu0 0.0
  %601 = vmatpush1.msra.mxu0 %v29
  %602 = vmatprep.subr.mxu0 0.0
  %603 = vmatpush1.msra.mxu0 %v30
  %604 = vmatprep.subr.mxu0 0.0
  %605 = vmatpush1.msra.mxu0 %v31
  %606 = vmatprep.subr.mxu0 0.0
  %607 = vmatpush1.msra.mxu0 %v32
  %608 = vmatprep.subr.mxu0 0.0
  %609 = vmatpush1.msra.mxu0 %v33
  %610 = vmatprep.subr.mxu0 0.0
  %611 = vmatpush1.msra.mxu0 %v34
  %612 = vmatprep.subr.mxu0 0.0
  %613 = vmatpush1.msra.mxu0 %v35
  %614 = vmatprep.subr.mxu0 0.0
  %615 = vmatpush1.msra.mxu0 %v36
  %616 = vmatprep.subr.mxu0 0.0
  %617 = vmatpush1.msra.mxu0 %v37
  %618 = vmatprep.subr.mxu0 0.0
  %619 = vmatpush1.msra.mxu0 0.0
  %620 = vmatprep.subr.mxu0 0.0
  %621 = vmatpush1.msra.mxu0 0.0
  %622 = vmatprep.subr.mxu0 0.0
  %623 = vmatpush1.msra.mxu0 0.0
  %624 = vmatprep.subr.mxu0 0.0
  %625 = vmatpush1.msra.mxu0 0.0
  %626 = vmatprep.subr.mxu0 0.0
  %627 = vmatpush1.msra.mxu0 0.0
  %628 = vmatprep.subr.mxu0 0.0
  %629 = vmatpush1.msra.mxu0 0.0
  %630 = vmatprep.subr.mxu0 0.0
  %631 = vmatpush1.msra.mxu0 0.0
  %632 = vmatprep.subr.mxu0 0.0
  %633 = vmatpush1.msra.mxu0 0.0
  %634 = vmatprep.subr.mxu0 0.0
  %635 = vmatpush1.msra.mxu0 0.0
  %636 = vmatprep.subr.mxu0 0.0
  %637 = vmatpush1.msra.mxu0 0.0
  %638 = vmatprep.subr.mxu0 0.0
  %639 = vmatpush1.msra.mxu0 0.0
  %640 = vmatprep.subr.mxu0 0.0
  %641 = vmatpush1.msra.mxu0 0.0
  %642 = vmatprep.subr.mxu0 0.0
  %643 = vmatpush1.msra.mxu0 0.0
  %644 = vmatprep.subr.mxu0 0.0
  %645 = vmatpush1.msra.mxu0 0.0
  %646 = vmatprep.subr.mxu0 0.0
  %647 = vmatpush1.msra.mxu0 0.0
  %648 = vmatprep.subr.mxu0 0.0
  %649 = vmatpush1.msra.mxu0 0.0
  %650 = vmatprep.mubr.f32.mxu0 0.0
  %651 = vmatmul.mubr.f32.gmra.mrb[0].mxu0 %v562
  %v652 = vpop.f32.mrb[0].mxu0
  %v653 = vadd.f32 0.0, %v652
  %v654 = vpop.f32.mrb[0].mxu0
  %655 = vdwg.mxu0
  %v656 = vadd.f32 %v585, %v653
  %s657 = scalar_lea.vmem %s2, 40
  %658 = vst [vmem:[%s657] sm:$0xff] %v578
  %s659 = sadd.s32 %s129, 5
  %p660 = scmp.lt.s32.totalorder %s659, 8
  %s661 = scalar_select %p660, 1, 0
  %s662 = scvt.s32.f32 %s661
  %v663 = vstv %s662
  %v664 = vmul.f32 %v663, %v578
  %s665 = ssub.f32 1.0, %s662
  %v666 = vstv %s665
  %v667 = vmul.f32 %v666, %v562
  %v668 = vadd.f32 %v664, %v667
  %v669 = vmul.f32 %v663, %v582
  %v670 = vmul.f32 %v666, %v565
  %v671 = vadd.f32 %v669, %v670
  %v672 = vmul.f32 %v663, %v656
  %v673 = vmul.f32 %v666, %v568
  %v674 = vadd.f32 %v672, %v673
  %v675 = vsub.f32 0.0, %v671
  %v676 = vadd.f32 %v675, %v674
  %v677 = vmul.f32 %v676, 0.1
  %v678 = vadd.f32 %v671, %v677
  %v679 = vmul.f32 %v674, 0.2
  %v680 = vsub.f32 %v674, %v679
  %v681 = vsub.f32 %v678, 1.0
  %vm682 = vcmp.gt.f32.partialorder %v681, 0.0
  %v683 = vsel %vm682, 1, 0
  %v684 = vcvt.s32.f32 %v683
  %v685 = vsub.f32 1.0, %v684
  %v686 = vmul.f32 %v685, %v678
  %v687 = vmul.f32 %v684, 0.0
  %v688 = vadd.f32 %v686, %v687
  %s689 = scalar_lea.vmem %s0, 48
  %v690 = vld [vmem:[%s689] sm:$0xff]
  %v691 = vadd.f32 %v680, %v690
  %692 = vmatprep.subr.mxu0 0.0
  %693 = vmatpush1.msra.mxu0 %v22
  %694 = vmatprep.subr.mxu0 0.0
  %695 = vmatpush1.msra.mxu0 %v23
  %696 = vmatprep.subr.mxu0 0.0
  %697 = vmatpush1.msra.mxu0 %v24
  %698 = vmatprep.subr.mxu0 0.0
  %699 = vmatpush1.msra.mxu0 %v25
  %700 = vmatprep.subr.mxu0 0.0
  %701 = vmatpush1.msra.mxu0 %v26
  %702 = vmatprep.subr.mxu0 0.0
  %703 = vmatpush1.msra.mxu0 %v27
  %704 = vmatprep.subr.mxu0 0.0
  %705 = vmatpush1.msra.mxu0 %v28
  %706 = vmatprep.subr.mxu0 0.0
  %707 = vmatpush1.msra.mxu0 %v29
  %708 = vmatprep.subr.mxu0 0.0
  %709 = vmatpush1.msra.mxu0 %v30
  %710 = vmatprep.subr.mxu0 0.0
  %711 = vmatpush1.msra.mxu0 %v31
  %712 = vmatprep.subr.mxu0 0.0
  %713 = vmatpush1.msra.mxu0 %v32
  %714 = vmatprep.subr.mxu0 0.0
  %715 = vmatpush1.msra.mxu0 %v33
  %716 = vmatprep.subr.mxu0 0.0
  %717 = vmatpush1.msra.mxu0 %v34
  %718 = vmatprep.subr.mxu0 0.0
  %719 = vmatpush1.msra.mxu0 %v35
  %720 = vmatprep.subr.mxu0 0.0
  %721 = vmatpush1.msra.mxu0 %v36
  %722 = vmatprep.subr.mxu0 0.0
  %723 = vmatpush1.msra.mxu0 %v37
  %724 = vmatprep.subr.mxu0 0.0
  %725 = vmatpush1.msra.mxu0 0.0
  %726 = vmatprep.subr.mxu0 0.0
  %727 = vmatpush1.msra.mxu0 0.0
  %728 = vmatprep.subr.mxu0 0.0
  %729 = vmatpush1.msra.mxu0 0.0
  %730 = vmatprep.subr.mxu0 0.0
  %731 = vmatpush1.msra.mxu0 0.0
  %732 = vmatprep.subr.mxu0 0.0
  %733 = vmatpush1.msra.mxu0 0.0
  %734 = vmatprep.subr.mxu0 0.0
  %735 = vmatpush1.msra.mxu0 0.0
  %736 = vmatprep.subr.mxu0 0.0
  %737 = vmatpush1.msra.mxu0 0.0
  %738 = vmatprep.subr.mxu0 0.0
  %739 = vmatpush1.msra.mxu0 0.0
  %740 = vmatprep.subr.mxu0 0.0
  %741 = vmatpush1.msra.mxu0 0.0
  %742 = vmatprep.subr.mxu0 0.0
  %743 = vmatpush1.msra.mxu0 0.0
  %744 = vmatprep.subr.mxu0 0.0
  %745 = vmatpush1.msra.mxu0 0.0
  %746 = vmatprep.subr.mxu0 0.0
  %747 = vmatpush1.msra.mxu0 0.0
  %748 = vmatprep.subr.mxu0 0.0
  %749 = vmatpush1.msra.mxu0 0.0
  %750 = vmatprep.subr.mxu0 0.0
  %751 = vmatpush1.msra.mxu0 0.0
  %752 = vmatprep.subr.mxu0 0.0
  %753 = vmatpush1.msra.mxu0 0.0
  %754 = vmatprep.subr.mxu0 0.0
  %755 = vmatpush1.msra.mxu0 0.0
  %756 = vmatprep.mubr.f32.mxu0 0.0
  %757 = vmatmul.mubr.f32.gmra.mrb[0].mxu0 %v668
  %v758 = vpop.f32.mrb[0].mxu0
  %v759 = vadd.f32 0.0, %v758
  %v760 = vpop.f32.mrb[0].mxu0
  %761 = vdwg.mxu0
  %v762 = vadd.f32 %v691, %v759
  %s763 = scalar_lea.vmem %s2, 48
  %764 = vst [vmem:[%s763] sm:$0xff] %v684
  %s765 = sadd.s32 %s129, 6
  %p766 = scmp.lt.s32.totalorder %s765, 8
  %s767 = scalar_select %p766, 1, 0
  %s768 = scvt.s32.f32 %s767
  %v769 = vstv %s768
  %v770 = vmul.f32 %v769, %v684
  %s771 = ssub.f32 1.0, %s768
  %v772 = vstv %s771
  %v773 = vmul.f32 %v772, %v668
  %v774 = vadd.f32 %v770, %v773
  %v775 = vmul.f32 %v769, %v688
  %v776 = vmul.f32 %v772, %v671
  %v777 = vadd.f32 %v775, %v776
  %v778 = vmul.f32 %v769, %v762
  %v779 = vmul.f32 %v772, %v674
  %v780 = vadd.f32 %v778, %v779
  %v781 = vsub.f32 0.0, %v777
  %v782 = vadd.f32 %v781, %v780
  %v783 = vmul.f32 %v782, 0.1
  %v784 = vadd.f32 %v777, %v783
  %v785 = vmul.f32 %v780, 0.2
  %v786 = vsub.f32 %v780, %v785
  %v787 = vsub.f32 %v784, 1.0
  %vm788 = vcmp.gt.f32.partialorder %v787, 0.0
  %v789 = vsel %vm788, 1, 0
  %v790 = vcvt.s32.f32 %v789
  %v791 = vsub.f32 1.0, %v790
  %v792 = vmul.f32 %v791, %v784
  %v793 = vmul.f32 %v790, 0.0
  %v794 = vadd.f32 %v792, %v793
  %s795 = scalar_lea.vmem %s0, 56
  %v796 = vld [vmem:[%s795] sm:$0xff]
  %v797 = vadd.f32 %v786, %v796
  %798 = vmatprep.subr.mxu0 0.0
  %799 = vmatpush1.msra.mxu0 %v22
  %800 = vmatprep.subr.mxu0 0.0
  %801 = vmatpush1.msra.mxu0 %v23
  %802 = vmatprep.subr.mxu0 0.0
  %803 = vmatpush1.msra.mxu0 %v24
  %804 = vmatprep.subr.mxu0 0.0
  %805 = vmatpush1.msra.mxu0 %v25
  %806 = vmatprep.subr.mxu0 0.0
  %807 = vmatpush1.msra.mxu0 %v26
  %808 = vmatprep.subr.mxu0 0.0
  %809 = vmatpush1.msra.mxu0 %v27
  %810 = vmatprep.subr.mxu0 0.0
  %811 = vmatpush1.msra.mxu0 %v28
  %812 = vmatprep.subr.mxu0 0.0
  %813 = vmatpush1.msra.mxu0 %v29
  %814 = vmatprep.subr.mxu0 0.0
  %815 = vmatpush1.msra.mxu0 %v30
  %816 = vmatprep.subr.mxu0 0.0
  %817 = vmatpush1.msra.mxu0 %v31
  %818 = vmatprep.subr.mxu0 0.0
  %819 = vmatpush1.msra.mxu0 %v32
  %820 = vmatprep.subr.mxu0 0.0
  %821 = vmatpush1.msra.mxu0 %v33
  %822 = vmatprep.subr.mxu0 0.0
  %823 = vmatpush1.msra.mxu0 %v34
  %824 = vmatprep.subr.mxu0 0.0
  %825 = vmatpush1.msra.mxu0 %v35
  %826 = vmatprep.subr.mxu0 0.0
  %827 = vmatpush1.msra.mxu0 %v36
  %828 = vmatprep.subr.mxu0 0.0
  %829 = vmatpush1.msra.mxu0 %v37
  %830 = vmatprep.subr.mxu0 0.0
  %831 = vmatpush1.msra.mxu0 0.0
  %832 = vmatprep.subr.mxu0 0.0
  %833 = vmatpush1.msra.mxu0 0.0
  %834 = vmatprep.subr.mxu0 0.0
  %835 = vmatpush1.msra.mxu0 0.0
  %836 = vmatprep.subr.mxu0 0.0
  %837 = vmatpush1.msra.mxu0 0.0
  %838 = vmatprep.subr.mxu0 0.0
  %839 = vmatpush1.msra.mxu0 0.0
  %840 = vmatprep.subr.mxu0 0.0
  %841 = vmatpush1.msra.mxu0 0.0
  %842 = vmatprep.subr.mxu0 0.0
  %843 = vmatpush1.msra.mxu0 0.0
  %844 = vmatprep.subr.mxu0 0.0
  %845 = vmatpush1.msra.mxu0 0.0
  %846 = vmatprep.subr.mxu0 0.0
  %847 = vmatpush1.msra.mxu0 0.0
  %848 = vmatprep.subr.mxu0 0.0
  %849 = vmatpush1.msra.mxu0 0.0
  %850 = vmatprep.subr.mxu0 0.0
  %851 = vmatpush1.msra.mxu0 0.0
  %852 = vmatprep.subr.mxu0 0.0
  %853 = vmatpush1.msra.mxu0 0.0
  %854 = vmatprep.subr.mxu0 0.0
  %855 = vmatpush1.msra.mxu0 0.0
  %856 = vmatprep.subr.mxu0 0.0
  %857 = vmatpush1.msra.mxu0 0.0
  %858 = vmatprep.subr.mxu0 0.0
  %859 = vmatpush1.msra.mxu0 0.0
  %860 = vmatprep.subr.mxu0 0.0
  %861 = vmatpush1.msra.mxu0 0.0
  %862 = vmatprep.mubr.f32.mxu0 0.0
  %863 = vmatmul.mubr.f32.gmra.mrb[0].mxu0 %v774
  %v864 = vpop.f32.mrb[0].mxu0
  %v865 = vadd.f32 0.0, %v864
  %v866 = vpop.f32.mrb[0].mxu0
  %867 = vdwg.mxu0
  %v868 = vadd.f32 %v797, %v865
  %s869 = scalar_lea.vmem %s2, 56
  %870 = vst [vmem:[%s869] sm:$0xff] %v790
  %s871 = sadd.s32 %s129, 7
  %p872 = scmp.lt.s32.totalorder %s871, 8
  %s873 = scalar_select %p872, 1, 0
  %s874 = scvt.s32.f32 %s873
  %v875 = vstv %s874
  %v876 = vmul.f32 %v875, %v790
  %s877 = ssub.f32 1.0, %s874
  %v878 = vstv %s877
  %v879 = vmul.f32 %v878, %v774
  %v880 = vadd.f32 %v876, %v879
  %v881 = vmul.f32 %v875, %v794
  %v882 = vmul.f32 %v878, %v777
  %v883 = vadd.f32 %v881, %v882
  %v884 = vmul.f32 %v875, %v868
  %v885 = vmul.f32 %v878, %v780
  %v886 = vadd.f32 %v884, %v885
  %887 = vst [vmem:[#allocation2] sm:$0xff] %v880
  %888 = vst [vmem:[#allocation3] sm:$0xff] %v883
  %889 = vst [vmem:[#allocation4] sm:$0xff] %v886
  // Predicated region
  $region14: #{snn_lif_forward.2} parent=0 // pred_check
    %p890 = pneg %p15
  $region15: #{snn_lif_forward.2} parent=0 // pred_check_branch
    %892 = sbr.rel (%p890) target = $region17
  $region16: #{snn_lif_forward.2} parent=0 // pred_region
    %v893 = vld [vmem:[#allocation2] sm:$0xff]
    %894 = vst [vmem:[%s3] sm:$0xff] %v893
    %v895 = vld [vmem:[#allocation3] sm:$0xff]
    %896 = vst [vmem:[%s4] sm:$0xff] %v895
    %v897 = vld [vmem:[#allocation4] sm:$0xff]
    %898 = vst [vmem:[%s5] sm:$0xff] %v897
  $region17: #{snn_lif_forward.2} parent=0 // pred_fallthru
    _
  // Predicated region
  $region18: #{snn_lif_forward.2} parent=0 // pred_check
    _
  $region19: #{snn_lif_forward.2} parent=0 // pred_check_branch
    %900 = sbr.rel (0) target = $region21
  $region20: #{snn_lif_forward.2} parent=0 // pred_region
    _
  $region21: #{snn_lif_forward.2} parent=0 // pred_fallthru
    _
  // Predicated region
  $region22: #{snn_lif_forward.2} parent=0 // pred_check
    _
  $region23: #{snn_lif_forward.2} parent=0 // pred_check_branch
    %902 = sbr.rel (0) target = $region25
  $region24: #{snn_lif_forward.2} parent=0 // pred_region
    _
  $region25: #{snn_lif_forward.2} parent=0 // pred_fallthru
    _
  // Predicated region
  $region26: #{snn_lif_forward.2} parent=0 // pred_check
    _
  $region27: #{snn_lif_forward.2} parent=0 // pred_check_branch
    %904 = sbr.rel (0) target = $region29
  $region28: #{snn_lif_forward.2} parent=0 // pred_region
    _
  $region29: #{snn_lif_forward.2} parent=0 // pred_fallthru
    _
  // Predicated region
  $region30: #{snn_lif_forward.2} parent=0 // pred_check
    _
  $region31: #{snn_lif_forward.2} parent=0 // pred_check_branch
    %906 = sbr.rel (0) target = $region33
  $region32: #{snn_lif_forward.2} parent=0 // pred_region
    _
  $region33: #{snn_lif_forward.2} parent=0 // pred_fallthru
    _
  // Predicated region
  $region34: #{snn_lif_forward.2} parent=0 // pred_check
    _
  $region35: #{snn_lif_forward.2} parent=0 // pred_check_branch
    %908 = sbr.rel (0) target = $region37
  $region36: #{snn_lif_forward.2} parent=0 // pred_region
    _
  $region37: #{snn_lif_forward.2} parent=0 // pred_fallthru
    _
  // Predicated region
  $region38: #{snn_lif_forward.2} parent=0 // pred_check
    _
  $region39: #{snn_lif_forward.2} parent=0 // pred_check_branch
    %910 = sbr.rel (0) target = $region41
  $region40: #{snn_lif_forward.2} parent=0 // pred_region
    _
  $region41: #{snn_lif_forward.2} parent=0 // pred_fallthru
    _
  // Predicated region
  $region42: #{snn_lif_forward.2} parent=0 // pred_check
    _
  $region43: #{snn_lif_forward.2} parent=0 // pred_check_branch
    %912 = sbr.rel (0) target = $region45
  $region44: #{snn_lif_forward.2} parent=0 // pred_region
    _
  $region45: #{snn_lif_forward.2} parent=0 // pred_fallthru
    _
  // Predicated region
  $region46: #{snn_lif_forward.2} parent=0 // pred_check
    _
  $region47: #{snn_lif_forward.2} parent=0 // pred_check_branch
    %914 = sbr.rel (0) target = $region49
  $region48: #{snn_lif_forward.2} parent=0 // pred_region
    _
  $region49: #{snn_lif_forward.2} parent=0 // pred_fallthru
    _

</llo_original>
